<compile_context>
chip_gen: v6e
topology: v6e:2x2x1
jax: 0.10.0
libtpu: 0.0.40
codegen_flags: <defaults>
</compile_context>

<pallas_src>
import functools

import jax
import jax.numpy as jnp
from jax import lax
from jax.experimental import pallas as pl
from jax.experimental.pallas import tpu as pltpu


# ----------------------------------------------------------------------------
# Kernel
# ----------------------------------------------------------------------------
def _traj_gen_kernel(
    xcat_ref,                                  # (T*B, 2D)  t-major rows, [pos|speed]
    wih_enc_ref, whh_enc_ref, b_enc_ref,       # (2D,8H), (2H,8H), (1,8H)
    ln_w_ref, ln_b_ref,                        # (1,H), (1,H)
    whh_dec_ref, wih_dec_ref, b_dec_ref,       # (2H,8H), (2D,8H), (1,8H)
    w_comb_ref, b_comb_ref,                    # (2H,8H), (1,8H)
    w_fc2_ref, b_fc2_ref,                      # (2H,2D), (1,2D)
    out_ref,                                   # (P*B, 2D) t-major rows, [pos|speed]
    *, T, B, P,
):
    D2 = xcat_ref.shape[1]
    H = ln_w_ref.shape[1]
    H2 = 2 * H                                  # fused state width
    G = 4 * H2                                  # fused gate width (8H)

    def fused_gate(gates, c):
        # gates: (B, 8H) laid out [i | f | g | o]; the g columns of every
        # gate-producing weight/bias were pre-scaled by 2 in pack_params, so
        # tanh(x) = 2*sigmoid(2x) - 1 requires only ONE full-width EUP sigmoid.
        sig = jax.nn.sigmoid(gates)
        i = sig[:, 0:H2]
        f = sig[:, H2:2 * H2]
        g = 2.0 * sig[:, 2 * H2:3 * H2] - 1.0
        o = sig[:, 3 * H2:4 * H2]
        c_new = f * c + i * g
        h_new = o * jnp.tanh(c_new)
        return h_new, c_new

    # ---- prologue: batched input projections (off the recurrent chains) ----
    xcat = xcat_ref[...]                                        # (T*B, 2D)
    xg_all = (jnp.dot(xcat, wih_enc_ref[...],
                      preferred_element_type=jnp.float32) + b_enc_ref[...])
    x_last = xcat[(T - 1) * B:T * B, :]                         # (B, 2D)
    xg_dec0 = (jnp.dot(x_last, wih_dec_ref[...],
                       preferred_element_type=jnp.float32) + b_dec_ref[...])

    # ---- fused encoders (pos + speed as ONE block-diagonal LSTM) -----------
    # TODO(synk): further latency win: keep whh_enc / w_comb resident in the
    # MXU across the serial steps via pltpu.matmul_push_rhs / matmul_acc_lhs /
    # matmul_pop (two (2H,128) halves on v5e's 128-wide MXUs, MRB accumulate
    # on v7x).
    h = jnp.zeros((B, H2), jnp.float32)
    c = jnp.zeros((B, H2), jnp.float32)
    for t in range(T):                          # fully unrolled (T static)
        gates = (xg_all[t * B:(t + 1) * B, :]
                 + jnp.dot(h, whh_enc_ref[...],
                           preferred_element_type=jnp.float32))
        h, c = fused_gate(gates, c)

    # ---- one fused LayerNorm over [h_pos; h_spd; c_pos; c_spd] -------------
    hc4 = jnp.concatenate([h[:, :H], h[:, H:], c[:, :H], c[:, H:]], axis=0)
    mu = jnp.mean(hc4, axis=-1, keepdims=True)
    var = jnp.mean((hc4 - mu) * (hc4 - mu), axis=-1, keepdims=True)
    ln4 = (hc4 - mu) * lax.rsqrt(var + 1e-5) * ln_w_ref[...] + ln_b_ref[...]
    hpo = ln4[0 * B:1 * B]
    hsp = ln4[1 * B:2 * B]
    cpo = ln4[2 * B:3 * B]
    csp = ln4[3 * B:4 * B]

    # concat_features=False:
    #   pos_decoder state   = (hpo, cpo)
    #   speed_decoder state = (hpo + hsp, cpo + csp)
    # fused decoder layout: block 0 = pos_decoder, block 1 = speed_decoder.
    h_dec = jnp.concatenate([hpo, hpo + hsp], axis=-1)          # (B, 2H)
    c_dec = jnp.concatenate([cpo, cpo + csp], axis=-1)          # (B, 2H)

    # ---- fused autoregressive decoder (fc feedback folded into recurrence) --
    # steps >= 1:  gates = h @ (W_hh + w_fc2 @ W_ih) + (b_dec + b_fc2 @ W_ih)
    # step 0 uses the true x0 projection (xg_dec0, hoisted above).
    b_comb_b = jnp.broadcast_to(b_comb_ref[...], (B, G))        # hoisted broadcast
    h_hist = []
    for t in range(P):                          # fully unrolled (P static)
        if t == 0:
            gates = xg_dec0 + jnp.dot(h_dec, whh_dec_ref[...],
                                      preferred_element_type=jnp.float32)
        else:
            gates = b_comb_b + jnp.dot(h_dec, w_comb_ref[...],
                                       preferred_element_type=jnp.float32)
        h_dec, c_dec = fused_gate(gates, c_dec)
        h_hist.append(h_dec)

    # ---- epilogue: one batched fc_speed + one store -------------------------
    h_all = jnp.concatenate(h_hist, axis=0)                     # (P*B, 2H)
    out = (jnp.dot(h_all, w_fc2_ref[...],
                   preferred_element_type=jnp.float32) + b_fc2_ref[...])
    out_ref[...] = out                                          # (P*B, 2D)


# ----------------------------------------------------------------------------
# Wrapper / parameter packing
# ----------------------------------------------------------------------------
def trajectory_generator(pos, speed, fused_params, pred_len):
    """pos, speed: (T, B, D) float32. Returns (pos_outputs, speed_outputs)."""
    T, B, D = pos.shape
    # (T, B, 2D) -> (T*B, 2D): one lane-aligned slab for the batched projection.
    xcat = jnp.concatenate([pos, speed], axis=-1).reshape(T * B, 2 * D)
    inputs = (xcat, *fused_params)
    kernel = functools.partial(_traj_gen_kernel, T=T, B=B, P=pred_len)
    out = pl.pallas_call(
        kernel,
        out_shape=jax.ShapeDtypeStruct((pred_len * B, 2 * D), jnp.float32),
        in_specs=[pl.BlockSpec(memory_space=pltpu.MemorySpace.VMEM)
                  for _ in inputs],
        out_specs=pl.BlockSpec(memory_space=pltpu.MemorySpace.VMEM),
    )(*inputs)
    # TODO(synk): for large-batch workloads add a leading grid over B with
    # dimension_semantics=("parallel",) so both v7x TensorCores are used.
    out = out.reshape(pred_len, B, 2 * D)
    return out[:, :, :D], out[:, :, D:]


def _fuse_blockdiag(w0_t, w1_t, H):
    """w0_t: (in0, 4H), w1_t: (in1, 4H) -> (in0+in1, 8H) block-diagonal weight
    with gate-column layout [i0 i1 | f0 f1 | g0 g1 | o0 o1]."""
    in0, in1 = w0_t.shape[0], w1_t.shape[0]
    z0 = jnp.zeros((in0, H), jnp.float32)
    z1 = jnp.zeros((in1, H), jnp.float32)
    cols = []
    for k in range(4):
        g0 = w0_t[:, k * H:(k + 1) * H]
        g1 = w1_t[:, k * H:(k + 1) * H]
        cols.append(jnp.concatenate([g0, z1], axis=0))   # feeds block-0 gate k
        cols.append(jnp.concatenate([z0, g1], axis=0))   # feeds block-1 gate k
    return jnp.concatenate(cols, axis=1)


def _fuse_bias(b0, b1, H):
    """b0, b1: (1, 4H) -> (1, 8H) in the fused gate-column layout."""
    segs = []
    for k in range(4):
        segs.append(b0[:, k * H:(k + 1) * H])
        segs.append(b1[:, k * H:(k + 1) * H])
    return jnp.concatenate(segs, axis=1)


def pack_params(raw):
    """Build fused / block-diagonal / fc-folded kernel weights."""
    (wih_pe, whh_pe, b_pe, wih_se, whh_se, b_se, ln_w, ln_b,
     wih_sd, whh_sd, b_sd, wih_pd, whh_pd, b_pd, w_fc, b_fc) = raw
    H = whh_pe.shape[0]
    D = wih_pe.shape[0]
    H2, G = 2 * H, 8 * H
    hi = jax.lax.Precision.HIGHEST

    # g-gate (tanh) columns pre-scaled by 2: tanh(x) = 2*sigmoid(2x) - 1.
    gate_scale = jnp.ones((G,), jnp.float32).at[2 * H2:3 * H2].set(2.0)

    # Encoder: block 0 = pos_encoder, block 1 = speed_encoder.
    wih_enc = _fuse_blockdiag(wih_pe, wih_se, H) * gate_scale    # (2D, 8H)
    whh_enc = _fuse_blockdiag(whh_pe, whh_se, H) * gate_scale    # (2H, 8H)
    b_enc = _fuse_bias(b_pe, b_se, H) * gate_scale               # (1, 8H)

    # Decoder: block 0 = pos_decoder, block 1 = speed_decoder.
    whh_dec = _fuse_blockdiag(whh_pd, whh_sd, H)                 # (2H, 8H)
    wih_dec = _fuse_blockdiag(wih_pd, wih_sd, H)                 # (2D, 8H)
    b_dec = _fuse_bias(b_pd, b_sd, H)                            # (1, 8H)

    # fc_speed applied to both decoder blocks in one matmul.
    w_fc2 = jnp.zeros((H2, 2 * D), jnp.float32)
    w_fc2 = w_fc2.at[:H, :D].set(w_fc)                           # hpo -> curr_pos
    w_fc2 = w_fc2.at[H:, D:].set(w_fc)                           # hds -> curr_speed
    b_fc2 = jnp.concatenate([b_fc, b_fc], axis=1)                # (1, 2D)

    # Fold the fc feedback into the recurrence (used for decoder steps >= 1).
    w_comb = (whh_dec + jnp.dot(w_fc2, wih_dec, precision=hi)) * gate_scale
    b_comb = (b_dec + jnp.dot(b_fc2, wih_dec, precision=hi)) * gate_scale

    whh_dec = whh_dec * gate_scale
    wih_dec = wih_dec * gate_scale
    b_dec = b_dec * gate_scale

    return (wih_enc, whh_enc, b_enc, ln_w, ln_b,
            whh_dec, wih_dec, b_dec, w_comb, b_comb, w_fc2, b_fc2)


# ----------------------------------------------------------------------------
# Synthetic params + pure-JAX reference (mirrors the PyTorch forward)
# ----------------------------------------------------------------------------
def init_params(key, data_dim, hidden_dim):
    """Deterministic synthetic params (PyTorch-style uniform(-1/sqrt(H), 1/sqrt(H)))."""
    D, H = data_dim, hidden_dim
    k = 1.0 / float(jnp.sqrt(float(H)))
    keys = iter(jax.random.split(key, 24))

    def u(shape):
        return jax.random.uniform(next(keys), shape, jnp.float32, -k, k)

    def lstm_params():
        wih = u((4 * H, D))          # PyTorch layout (4H, in)
        whh = u((4 * H, H))          # PyTorch layout (4H, H)
        b_ih = u((4 * H,))
        b_hh = u((4 * H,))
        # pre-transpose + fuse biases
        return wih.T, whh.T, (b_ih + b_hh).reshape(1, 4 * H)

    pe = lstm_params()               # pos_encoder
    se = lstm_params()               # speed_encoder
    ln_w = jnp.ones((1, H), jnp.float32)   # nn.LayerNorm default init
    ln_b = jnp.zeros((1, H), jnp.float32)
    sd = lstm_params()               # speed_decoder LSTMCell
    pd = lstm_params()               # pos_decoder LSTMCell
    w_fc = u((D, H)).T               # fc_speed, pre-transposed -> (H, D)
    b_fc = u((D,)).reshape(1, D)
    return (*pe, *se, ln_w, ln_b, *sd, *pd, w_fc, b_fc)


def reference_forward(pos, speed, params, pred_len):
    """Pure-JAX mirror of the PyTorch forward (for correctness check)."""
    (wih_pe, whh_pe, b_pe, wih_se, whh_se, b_se, ln_w, ln_b,
     wih_sd, whh_sd, b_sd, wih_pd, whh_pd, b_pd, w_fc, b_fc) = params
    H = whh_pe.shape[0]
    hi = jax.lax.Precision.HIGHEST

    def lstm_step(x, h, c, wih, whh, b):
        gates = jnp.dot(x, wih, precision=hi) + jnp.dot(h, whh, precision=hi) + b
        i = jax.nn.sigmoid(gates[:, :H])
        f = jax.nn.sigmoid(gates[:, H:2 * H])
        g = jnp.tanh(gates[:, 2 * H:3 * H])
        o = jax.nn.sigmoid(gates[:, 3 * H:])
        c = f * c + i * g
        return o * jnp.tanh(c), c

    def ln(x):
        mu = x.mean(-1, keepdims=True)
        var = ((x - mu) ** 2).mean(-1, keepdims=True)
        return (x - mu) / jnp.sqrt(var + 1e-5) * ln_w + ln_b

    T, B, D = pos.shape
    hpo = cpo = jnp.zeros((B, H), jnp.float32)
    for t in range(T):
        hpo, cpo = lstm_step(pos[t], hpo, cpo, wih_pe, whh_pe, b_pe)
    hpo, cpo = ln(hpo), ln(cpo)
    hsp = csp = jnp.zeros((B, H), jnp.float32)
    for t in range(T):
        hsp, csp = lstm_step(speed[t], hsp, csp, wih_se, whh_se, b_se)
    hsp, csp = ln(hsp), ln(csp)
    hds, cds = hpo + hsp, cpo + csp
    curr_speed, curr_pos = speed[-1], pos[-1]
    spd_outs, pos_outs = [], []
    for _ in range(pred_len):
        hds, cds = lstm_step(curr_speed, hds, cds, wih_sd, whh_sd, b_sd)
        curr_speed = jnp.dot(hds, w_fc, precision=hi) + b_fc
        spd_outs.append(curr_speed)
        hpo, cpo = lstm_step(curr_pos, hpo, cpo, wih_pd, whh_pd, b_pd)
        curr_pos = jnp.dot(hpo, w_fc, precision=hi) + b_fc
        pos_outs.append(curr_pos)
    return jnp.stack(pos_outs), jnp.stack(spd_outs)


if __name__ == "__main__":
    D, H, T, B, PRED = 2, 32, 8, 2, 8   # data_dim, hidden_dim, obs_len, batch, pred_len
    key = jax.random.PRNGKey(0)
    k_pos, k_spd, k_par = jax.random.split(key, 3)
    pos = jax.random.normal(k_pos, (T, B, D), jnp.float32)
    speed = jax.random.normal(k_spd, (T, B, D), jnp.float32) * 0.1
    raw_params = init_params(k_par, D, H)
    fused_params = pack_params(raw_params)

    pos_out, spd_out = trajectory_generator(pos, speed, fused_params, PRED)
    jax.block_until_ready((pos_out, spd_out))

    ref_pos, ref_spd = reference_forward(pos, speed, raw_params, PRED)
    assert pos_out.shape == (PRED, B, D) and spd_out.shape == (PRED, B, D)
    assert jnp.allclose(pos_out, ref_pos, atol=2e-3, rtol=2e-3), \
        float(jnp.max(jnp.abs(pos_out - ref_pos)))
    assert jnp.allclose(spd_out, ref_spd, atol=2e-3, rtol=2e-3), \
        float(jnp.max(jnp.abs(spd_out - ref_spd)))
    print("KERNEL_OK")
</pallas_src>

<mosaic_0001>
module attributes {stable_mosaic.version = 11 : i64} {
  func.func @_traj_gen_kernel(%arg0: memref<16x4xf32, #tpu.memory_space<vmem>>, %arg1: memref<4x256xf32, #tpu.memory_space<vmem>>, %arg2: memref<64x256xf32, #tpu.memory_space<vmem>>, %arg3: memref<1x256xf32, #tpu.memory_space<vmem>>, %arg4: memref<1x32xf32, #tpu.memory_space<vmem>>, %arg5: memref<1x32xf32, #tpu.memory_space<vmem>>, %arg6: memref<64x256xf32, #tpu.memory_space<vmem>>, %arg7: memref<4x256xf32, #tpu.memory_space<vmem>>, %arg8: memref<1x256xf32, #tpu.memory_space<vmem>>, %arg9: memref<64x256xf32, #tpu.memory_space<vmem>>, %arg10: memref<1x256xf32, #tpu.memory_space<vmem>>, %arg11: memref<64x4xf32, #tpu.memory_space<vmem>>, %arg12: memref<1x4xf32, #tpu.memory_space<vmem>>, %arg13: memref<16x4xf32, #tpu.memory_space<vmem>>) attributes {dimension_semantics = [], scalar_prefetch = 0 : i64, scratch_operands = 0 : i64, tpu.core_type = #tpu.core_type<tc>} {
    %c0 = arith.constant 0 : index
    %c0_0 = arith.constant 0 : index
    %0 = vector.load %arg0[%c0, %c0_0] : memref<16x4xf32, #tpu.memory_space<vmem>>, vector<16x4xf32>
    %c0_1 = arith.constant 0 : index
    %c0_2 = arith.constant 0 : index
    %1 = vector.load %arg1[%c0_1, %c0_2] : memref<4x256xf32, #tpu.memory_space<vmem>>, vector<4x256xf32>
    %cst = arith.constant dense<0.000000e+00> : vector<16x256xf32>
    %2 = tpu.matmul %0, %1, %cst {dimension_numbers = #tpu.dot_dimension_numbers<[1], [0], [0], [1], [0, 0, 1, 1], [], []>} : vector<16x4xf32>, vector<4x256xf32>, vector<16x256xf32> -> vector<16x256xf32>
    %c0_3 = arith.constant 0 : index
    %c0_4 = arith.constant 0 : index
    %3 = vector.load %arg3[%c0_3, %c0_4] : memref<1x256xf32, #tpu.memory_space<vmem>>, vector<1x256xf32>
    %4 = vector.broadcast %3 : vector<1x256xf32> to vector<16x256xf32>
    %5 = arith.addf %2, %4 : vector<16x256xf32>
    %6 = vector.extract_strided_slice %0 {offsets = [14, 0], sizes = [2, 4], strides = [1, 1]} : vector<16x4xf32> to vector<2x4xf32>
    %c0_5 = arith.constant 0 : index
    %c0_6 = arith.constant 0 : index
    %7 = vector.load %arg7[%c0_5, %c0_6] : memref<4x256xf32, #tpu.memory_space<vmem>>, vector<4x256xf32>
    %cst_7 = arith.constant dense<0.000000e+00> : vector<2x256xf32>
    %8 = tpu.matmul %6, %7, %cst_7 {dimension_numbers = #tpu.dot_dimension_numbers<[1], [0], [0], [1], [0, 0, 1, 1], [], []>} : vector<2x4xf32>, vector<4x256xf32>, vector<2x256xf32> -> vector<2x256xf32>
    %c0_8 = arith.constant 0 : index
    %c0_9 = arith.constant 0 : index
    %9 = vector.load %arg8[%c0_8, %c0_9] : memref<1x256xf32, #tpu.memory_space<vmem>>, vector<1x256xf32>
    %10 = vector.broadcast %9 : vector<1x256xf32> to vector<2x256xf32>
    %11 = arith.addf %8, %10 : vector<2x256xf32>
    %cst_10 = arith.constant 0.000000e+00 : f32
    %12 = vector.broadcast %cst_10 : f32 to vector<2x64xf32>
    %cst_11 = arith.constant 0.000000e+00 : f32
    %13 = vector.broadcast %cst_11 : f32 to vector<2x64xf32>
    %14 = vector.extract_strided_slice %5 {offsets = [0, 0], sizes = [2, 256], strides = [1, 1]} : vector<16x256xf32> to vector<2x256xf32>
    %c0_12 = arith.constant 0 : index
    %c0_13 = arith.constant 0 : index
    %15 = vector.load %arg2[%c0_12, %c0_13] : memref<64x256xf32, #tpu.memory_space<vmem>>, vector<64x256xf32>
    %cst_14 = arith.constant dense<0.000000e+00> : vector<2x256xf32>
    %16 = tpu.matmul %12, %15, %cst_14 {dimension_numbers = #tpu.dot_dimension_numbers<[1], [0], [0], [1], [0, 0, 1, 1], [], []>} : vector<2x64xf32>, vector<64x256xf32>, vector<2x256xf32> -> vector<2x256xf32>
    %17 = arith.addf %14, %16 : vector<2x256xf32>
    %18 = arith.negf %17 : vector<2x256xf32>
    %19 = math.exp %18 : vector<2x256xf32>
    %cst_15 = arith.constant 1.000000e+00 : f32
    %20 = vector.broadcast %cst_15 : f32 to vector<2x256xf32>
    %21 = arith.addf %20, %19 : vector<2x256xf32>
    %22 = arith.divf %20, %21 : vector<2x256xf32>
    %23 = vector.extract_strided_slice %22 {offsets = [0, 0], sizes = [2, 64], strides = [1, 1]} : vector<2x256xf32> to vector<2x64xf32>
    %24 = vector.extract_strided_slice %22 {offsets = [0, 64], sizes = [2, 64], strides = [1, 1]} : vector<2x256xf32> to vector<2x64xf32>
    %25 = vector.extract_strided_slice %22 {offsets = [0, 128], sizes = [2, 64], strides = [1, 1]} : vector<2x256xf32> to vector<2x64xf32>
    %cst_16 = arith.constant 2.000000e+00 : f32
    %26 = vector.broadcast %cst_16 : f32 to vector<2x64xf32>
    %27 = arith.mulf %26, %25 : vector<2x64xf32>
    %cst_17 = arith.constant 1.000000e+00 : f32
    %28 = vector.broadcast %cst_17 : f32 to vector<2x64xf32>
    %29 = arith.subf %27, %28 : vector<2x64xf32>
    %30 = vector.extract_strided_slice %22 {offsets = [0, 192], sizes = [2, 64], strides = [1, 1]} : vector<2x256xf32> to vector<2x64xf32>
    %31 = arith.mulf %24, %13 : vector<2x64xf32>
    %32 = arith.mulf %23, %29 : vector<2x64xf32>
    %33 = arith.addf %31, %32 : vector<2x64xf32>
    %34 = math.tanh %33 : vector<2x64xf32>
    %35 = arith.mulf %30, %34 : vector<2x64xf32>
    %36 = vector.extract_strided_slice %5 {offsets = [2, 0], sizes = [2, 256], strides = [1, 1]} : vector<16x256xf32> to vector<2x256xf32>
    %c0_18 = arith.constant 0 : index
    %c0_19 = arith.constant 0 : index
    %37 = vector.load %arg2[%c0_18, %c0_19] : memref<64x256xf32, #tpu.memory_space<vmem>>, vector<64x256xf32>
    %cst_20 = arith.constant dense<0.000000e+00> : vector<2x256xf32>
    %38 = tpu.matmul %35, %37, %cst_20 {dimension_numbers = #tpu.dot_dimension_numbers<[1], [0], [0], [1], [0, 0, 1, 1], [], []>} : vector<2x64xf32>, vector<64x256xf32>, vector<2x256xf32> -> vector<2x256xf32>
    %39 = arith.addf %36, %38 : vector<2x256xf32>
    %40 = arith.negf %39 : vector<2x256xf32>
    %41 = math.exp %40 : vector<2x256xf32>
    %cst_21 = arith.constant 1.000000e+00 : f32
    %42 = vector.broadcast %cst_21 : f32 to vector<2x256xf32>
    %43 = arith.addf %42, %41 : vector<2x256xf32>
    %44 = arith.divf %42, %43 : vector<2x256xf32>
    %45 = vector.extract_strided_slice %44 {offsets = [0, 0], sizes = [2, 64], strides = [1, 1]} : vector<2x256xf32> to vector<2x64xf32>
    %46 = vector.extract_strided_slice %44 {offsets = [0, 64], sizes = [2, 64], strides = [1, 1]} : vector<2x256xf32> to vector<2x64xf32>
    %47 = vector.extract_strided_slice %44 {offsets = [0, 128], sizes = [2, 64], strides = [1, 1]} : vector<2x256xf32> to vector<2x64xf32>
    %cst_22 = arith.constant 2.000000e+00 : f32
    %48 = vector.broadcast %cst_22 : f32 to vector<2x64xf32>
    %49 = arith.mulf %48, %47 : vector<2x64xf32>
    %cst_23 = arith.constant 1.000000e+00 : f32
    %50 = vector.broadcast %cst_23 : f32 to vector<2x64xf32>
    %51 = arith.subf %49, %50 : vector<2x64xf32>
    %52 = vector.extract_strided_slice %44 {offsets = [0, 192], sizes = [2, 64], strides = [1, 1]} : vector<2x256xf32> to vector<2x64xf32>
    %53 = arith.mulf %46, %33 : vector<2x64xf32>
    %54 = arith.mulf %45, %51 : vector<2x64xf32>
    %55 = arith.addf %53, %54 : vector<2x64xf32>
    %56 = math.tanh %55 : vector<2x64xf32>
    %57 = arith.mulf %52, %56 : vector<2x64xf32>
    %58 = vector.extract_strided_slice %5 {offsets = [4, 0], sizes = [2, 256], strides = [1, 1]} : vector<16x256xf32> to vector<2x256xf32>
    %c0_24 = arith.constant 0 : index
    %c0_25 = arith.constant 0 : index
    %59 = vector.load %arg2[%c0_24, %c0_25] : memref<64x256xf32, #tpu.memory_space<vmem>>, vector<64x256xf32>
    %cst_26 = arith.constant dense<0.000000e+00> : vector<2x256xf32>
    %60 = tpu.matmul %57, %59, %cst_26 {dimension_numbers = #tpu.dot_dimension_numbers<[1], [0], [0], [1], [0, 0, 1, 1], [], []>} : vector<2x64xf32>, vector<64x256xf32>, vector<2x256xf32> -> vector<2x256xf32>
    %61 = arith.addf %58, %60 : vector<2x256xf32>
    %62 = arith.negf %61 : vector<2x256xf32>
    %63 = math.exp %62 : vector<2x256xf32>
    %cst_27 = arith.constant 1.000000e+00 : f32
    %64 = vector.broadcast %cst_27 : f32 to vector<2x256xf32>
    %65 = arith.addf %64, %63 : vector<2x256xf32>
    %66 = arith.divf %64, %65 : vector<2x256xf32>
    %67 = vector.extract_strided_slice %66 {offsets = [0, 0], sizes = [2, 64], strides = [1, 1]} : vector<2x256xf32> to vector<2x64xf32>
    %68 = vector.extract_strided_slice %66 {offsets = [0, 64], sizes = [2, 64], strides = [1, 1]} : vector<2x256xf32> to vector<2x64xf32>
    %69 = vector.extract_strided_slice %66 {offsets = [0, 128], sizes = [2, 64], strides = [1, 1]} : vector<2x256xf32> to vector<2x64xf32>
    %cst_28 = arith.constant 2.000000e+00 : f32
    %70 = vector.broadcast %cst_28 : f32 to vector<2x64xf32>
    %71 = arith.mulf %70, %69 : vector<2x64xf32>
    %cst_29 = arith.constant 1.000000e+00 : f32
    %72 = vector.broadcast %cst_29 : f32 to vector<2x64xf32>
    %73 = arith.subf %71, %72 : vector<2x64xf32>
    %74 = vector.extract_strided_slice %66 {offsets = [0, 192], sizes = [2, 64], strides = [1, 1]} : vector<2x256xf32> to vector<2x64xf32>
    %75 = arith.mulf %68, %55 : vector<2x64xf32>
    %76 = arith.mulf %67, %73 : vector<2x64xf32>
    %77 = arith.addf %75, %76 : vector<2x64xf32>
    %78 = math.tanh %77 : vector<2x64xf32>
    %79 = arith.mulf %74, %78 : vector<2x64xf32>
    %80 = vector.extract_strided_slice %5 {offsets = [6, 0], sizes = [2, 256], strides = [1, 1]} : vector<16x256xf32> to vector<2x256xf32>
    %c0_30 = arith.constant 0 : index
    %c0_31 = arith.constant 0 : index
    %81 = vector.load %arg2[%c0_30, %c0_31] : memref<64x256xf32, #tpu.memory_space<vmem>>, vector<64x256xf32>
    %cst_32 = arith.constant dense<0.000000e+00> : vector<2x256xf32>
    %82 = tpu.matmul %79, %81, %cst_32 {dimension_numbers = #tpu.dot_dimension_numbers<[1], [0], [0], [1], [0, 0, 1, 1], [], []>} : vector<2x64xf32>, vector<64x256xf32>, vector<2x256xf32> -> vector<2x256xf32>
    %83 = arith.addf %80, %82 : vector<2x256xf32>
    %84 = arith.negf %83 : vector<2x256xf32>
    %85 = math.exp %84 : vector<2x256xf32>
    %cst_33 = arith.constant 1.000000e+00 : f32
    %86 = vector.broadcast %cst_33 : f32 to vector<2x256xf32>
    %87 = arith.addf %86, %85 : vector<2x256xf32>
    %88 = arith.divf %86, %87 : vector<2x256xf32>
    %89 = vector.extract_strided_slice %88 {offsets = [0, 0], sizes = [2, 64], strides = [1, 1]} : vector<2x256xf32> to vector<2x64xf32>
    %90 = vector.extract_strided_slice %88 {offsets = [0, 64], sizes = [2, 64], strides = [1, 1]} : vector<2x256xf32> to vector<2x64xf32>
    %91 = vector.extract_strided_slice %88 {offsets = [0, 128], sizes = [2, 64], strides = [1, 1]} : vector<2x256xf32> to vector<2x64xf32>
    %cst_34 = arith.constant 2.000000e+00 : f32
    %92 = vector.broadcast %cst_34 : f32 to vector<2x64xf32>
    %93 = arith.mulf %92, %91 : vector<2x64xf32>
    %cst_35 = arith.constant 1.000000e+00 : f32
    %94 = vector.broadcast %cst_35 : f32 to vector<2x64xf32>
    %95 = arith.subf %93, %94 : vector<2x64xf32>
    %96 = vector.extract_strided_slice %88 {offsets = [0, 192], sizes = [2, 64], strides = [1, 1]} : vector<2x256xf32> to vector<2x64xf32>
    %97 = arith.mulf %90, %77 : vector<2x64xf32>
    %98 = arith.mulf %89, %95 : vector<2x64xf32>
    %99 = arith.addf %97, %98 : vector<2x64xf32>
    %100 = math.tanh %99 : vector<2x64xf32>
    %101 = arith.mulf %96, %100 : vector<2x64xf32>
    %102 = vector.extract_strided_slice %5 {offsets = [8, 0], sizes = [2, 256], strides = [1, 1]} : vector<16x256xf32> to vector<2x256xf32>
    %c0_36 = arith.constant 0 : index
    %c0_37 = arith.constant 0 : index
    %103 = vector.load %arg2[%c0_36, %c0_37] : memref<64x256xf32, #tpu.memory_space<vmem>>, vector<64x256xf32>
    %cst_38 = arith.constant dense<0.000000e+00> : vector<2x256xf32>
    %104 = tpu.matmul %101, %103, %cst_38 {dimension_numbers = #tpu.dot_dimension_numbers<[1], [0], [0], [1], [0, 0, 1, 1], [], []>} : vector<2x64xf32>, vector<64x256xf32>, vector<2x256xf32> -> vector<2x256xf32>
    %105 = arith.addf %102, %104 : vector<2x256xf32>
    %106 = arith.negf %105 : vector<2x256xf32>
    %107 = math.exp %106 : vector<2x256xf32>
    %cst_39 = arith.constant 1.000000e+00 : f32
    %108 = vector.broadcast %cst_39 : f32 to vector<2x256xf32>
    %109 = arith.addf %108, %107 : vector<2x256xf32>
    %110 = arith.divf %108, %109 : vector<2x256xf32>
    %111 = vector.extract_strided_slice %110 {offsets = [0, 0], sizes = [2, 64], strides = [1, 1]} : vector<2x256xf32> to vector<2x64xf32>
    %112 = vector.extract_strided_slice %110 {offsets = [0, 64], sizes = [2, 64], strides = [1, 1]} : vector<2x256xf32> to vector<2x64xf32>
    %113 = vector.extract_strided_slice %110 {offsets = [0, 128], sizes = [2, 64], strides = [1, 1]} : vector<2x256xf32> to vector<2x64xf32>
    %cst_40 = arith.constant 2.000000e+00 : f32
    %114 = vector.broadcast %cst_40 : f32 to vector<2x64xf32>
    %115 = arith.mulf %114, %113 : vector<2x64xf32>
    %cst_41 = arith.constant 1.000000e+00 : f32
    %116 = vector.broadcast %cst_41 : f32 to vector<2x64xf32>
    %117 = arith.subf %115, %116 : vector<2x64xf32>
    %118 = vector.extract_strided_slice %110 {offsets = [0, 192], sizes = [2, 64], strides = [1, 1]} : vector<2x256xf32> to vector<2x64xf32>
    %119 = arith.mulf %112, %99 : vector<2x64xf32>
    %120 = arith.mulf %111, %117 : vector<2x64xf32>
    %121 = arith.addf %119, %120 : vector<2x64xf32>
    %122 = math.tanh %121 : vector<2x64xf32>
    %123 = arith.mulf %118, %122 : vector<2x64xf32>
    %124 = vector.extract_strided_slice %5 {offsets = [10, 0], sizes = [2, 256], strides = [1, 1]} : vector<16x256xf32> to vector<2x256xf32>
    %c0_42 = arith.constant 0 : index
    %c0_43 = arith.constant 0 : index
    %125 = vector.load %arg2[%c0_42, %c0_43] : memref<64x256xf32, #tpu.memory_space<vmem>>, vector<64x256xf32>
    %cst_44 = arith.constant dense<0.000000e+00> : vector<2x256xf32>
    %126 = tpu.matmul %123, %125, %cst_44 {dimension_numbers = #tpu.dot_dimension_numbers<[1], [0], [0], [1], [0, 0, 1, 1], [], []>} : vector<2x64xf32>, vector<64x256xf32>, vector<2x256xf32> -> vector<2x256xf32>
    %127 = arith.addf %124, %126 : vector<2x256xf32>
    %128 = arith.negf %127 : vector<2x256xf32>
    %129 = math.exp %128 : vector<2x256xf32>
    %cst_45 = arith.constant 1.000000e+00 : f32
    %130 = vector.broadcast %cst_45 : f32 to vector<2x256xf32>
    %131 = arith.addf %130, %129 : vector<2x256xf32>
    %132 = arith.divf %130, %131 : vector<2x256xf32>
    %133 = vector.extract_strided_slice %132 {offsets = [0, 0], sizes = [2, 64], strides = [1, 1]} : vector<2x256xf32> to vector<2x64xf32>
    %134 = vector.extract_strided_slice %132 {offsets = [0, 64], sizes = [2, 64], strides = [1, 1]} : vector<2x256xf32> to vector<2x64xf32>
    %135 = vector.extract_strided_slice %132 {offsets = [0, 128], sizes = [2, 64], strides = [1, 1]} : vector<2x256xf32> to vector<2x64xf32>
    %cst_46 = arith.constant 2.000000e+00 : f32
    %136 = vector.broadcast %cst_46 : f32 to vector<2x64xf32>
    %137 = arith.mulf %136, %135 : vector<2x64xf32>
    %cst_47 = arith.constant 1.000000e+00 : f32
    %138 = vector.broadcast %cst_47 : f32 to vector<2x64xf32>
    %139 = arith.subf %137, %138 : vector<2x64xf32>
    %140 = vector.extract_strided_slice %132 {offsets = [0, 192], sizes = [2, 64], strides = [1, 1]} : vector<2x256xf32> to vector<2x64xf32>
    %141 = arith.mulf %134, %121 : vector<2x64xf32>
    %142 = arith.mulf %133, %139 : vector<2x64xf32>
    %143 = arith.addf %141, %142 : vector<2x64xf32>
    %144 = math.tanh %143 : vector<2x64xf32>
    %145 = arith.mulf %140, %144 : vector<2x64xf32>
    %146 = vector.extract_strided_slice %5 {offsets = [12, 0], sizes = [2, 256], strides = [1, 1]} : vector<16x256xf32> to vector<2x256xf32>
    %c0_48 = arith.constant 0 : index
    %c0_49 = arith.constant 0 : index
    %147 = vector.load %arg2[%c0_48, %c0_49] : memref<64x256xf32, #tpu.memory_space<vmem>>, vector<64x256xf32>
    %cst_50 = arith.constant dense<0.000000e+00> : vector<2x256xf32>
    %148 = tpu.matmul %145, %147, %cst_50 {dimension_numbers = #tpu.dot_dimension_numbers<[1], [0], [0], [1], [0, 0, 1, 1], [], []>} : vector<2x64xf32>, vector<64x256xf32>, vector<2x256xf32> -> vector<2x256xf32>
    %149 = arith.addf %146, %148 : vector<2x256xf32>
    %150 = arith.negf %149 : vector<2x256xf32>
    %151 = math.exp %150 : vector<2x256xf32>
    %cst_51 = arith.constant 1.000000e+00 : f32
    %152 = vector.broadcast %cst_51 : f32 to vector<2x256xf32>
    %153 = arith.addf %152, %151 : vector<2x256xf32>
    %154 = arith.divf %152, %153 : vector<2x256xf32>
    %155 = vector.extract_strided_slice %154 {offsets = [0, 0], sizes = [2, 64], strides = [1, 1]} : vector<2x256xf32> to vector<2x64xf32>
    %156 = vector.extract_strided_slice %154 {offsets = [0, 64], sizes = [2, 64], strides = [1, 1]} : vector<2x256xf32> to vector<2x64xf32>
    %157 = vector.extract_strided_slice %154 {offsets = [0, 128], sizes = [2, 64], strides = [1, 1]} : vector<2x256xf32> to vector<2x64xf32>
    %cst_52 = arith.constant 2.000000e+00 : f32
    %158 = vector.broadcast %cst_52 : f32 to vector<2x64xf32>
    %159 = arith.mulf %158, %157 : vector<2x64xf32>
    %cst_53 = arith.constant 1.000000e+00 : f32
    %160 = vector.broadcast %cst_53 : f32 to vector<2x64xf32>
    %161 = arith.subf %159, %160 : vector<2x64xf32>
    %162 = vector.extract_strided_slice %154 {offsets = [0, 192], sizes = [2, 64], strides = [1, 1]} : vector<2x256xf32> to vector<2x64xf32>
    %163 = arith.mulf %156, %143 : vector<2x64xf32>
    %164 = arith.mulf %155, %161 : vector<2x64xf32>
    %165 = arith.addf %163, %164 : vector<2x64xf32>
    %166 = math.tanh %165 : vector<2x64xf32>
    %167 = arith.mulf %162, %166 : vector<2x64xf32>
    %168 = vector.extract_strided_slice %5 {offsets = [14, 0], sizes = [2, 256], strides = [1, 1]} : vector<16x256xf32> to vector<2x256xf32>
    %c0_54 = arith.constant 0 : index
    %c0_55 = arith.constant 0 : index
    %169 = vector.load %arg2[%c0_54, %c0_55] : memref<64x256xf32, #tpu.memory_space<vmem>>, vector<64x256xf32>
    %cst_56 = arith.constant dense<0.000000e+00> : vector<2x256xf32>
    %170 = tpu.matmul %167, %169, %cst_56 {dimension_numbers = #tpu.dot_dimension_numbers<[1], [0], [0], [1], [0, 0, 1, 1], [], []>} : vector<2x64xf32>, vector<64x256xf32>, vector<2x256xf32> -> vector<2x256xf32>
    %171 = arith.addf %168, %170 : vector<2x256xf32>
    %172 = arith.negf %171 : vector<2x256xf32>
    %173 = math.exp %172 : vector<2x256xf32>
    %cst_57 = arith.constant 1.000000e+00 : f32
    %174 = vector.broadcast %cst_57 : f32 to vector<2x256xf32>
    %175 = arith.addf %174, %173 : vector<2x256xf32>
    %176 = arith.divf %174, %175 : vector<2x256xf32>
    %177 = vector.extract_strided_slice %176 {offsets = [0, 0], sizes = [2, 64], strides = [1, 1]} : vector<2x256xf32> to vector<2x64xf32>
    %178 = vector.extract_strided_slice %176 {offsets = [0, 64], sizes = [2, 64], strides = [1, 1]} : vector<2x256xf32> to vector<2x64xf32>
    %179 = vector.extract_strided_slice %176 {offsets = [0, 128], sizes = [2, 64], strides = [1, 1]} : vector<2x256xf32> to vector<2x64xf32>
    %cst_58 = arith.constant 2.000000e+00 : f32
    %180 = vector.broadcast %cst_58 : f32 to vector<2x64xf32>
    %181 = arith.mulf %180, %179 : vector<2x64xf32>
    %cst_59 = arith.constant 1.000000e+00 : f32
    %182 = vector.broadcast %cst_59 : f32 to vector<2x64xf32>
    %183 = arith.subf %181, %182 : vector<2x64xf32>
    %184 = vector.extract_strided_slice %176 {offsets = [0, 192], sizes = [2, 64], strides = [1, 1]} : vector<2x256xf32> to vector<2x64xf32>
    %185 = arith.mulf %178, %165 : vector<2x64xf32>
    %186 = arith.mulf %177, %183 : vector<2x64xf32>
    %187 = arith.addf %185, %186 : vector<2x64xf32>
    %188 = math.tanh %187 : vector<2x64xf32>
    %189 = arith.mulf %184, %188 : vector<2x64xf32>
    %190 = vector.extract_strided_slice %189 {offsets = [0, 0], sizes = [2, 32], strides = [1, 1]} : vector<2x64xf32> to vector<2x32xf32>
    %191 = vector.extract_strided_slice %189 {offsets = [0, 32], sizes = [2, 32], strides = [1, 1]} : vector<2x64xf32> to vector<2x32xf32>
    %192 = vector.extract_strided_slice %187 {offsets = [0, 0], sizes = [2, 32], strides = [1, 1]} : vector<2x64xf32> to vector<2x32xf32>
    %193 = vector.extract_strided_slice %187 {offsets = [0, 32], sizes = [2, 32], strides = [1, 1]} : vector<2x64xf32> to vector<2x32xf32>
    %194 = tpu.concatenate %190, %191, %192, %193 in 0 : vector<2x32xf32>, vector<2x32xf32>, vector<2x32xf32>, vector<2x32xf32> -> vector<8x32xf32>
    %cst_60 = arith.constant dense<0.000000e+00> : vector<8xf32>
    %195 = vector.multi_reduction <add>, %194, %cst_60 [1] : vector<8x32xf32> to vector<8xf32>
    %196 = vector.shape_cast %195 : vector<8xf32> to vector<8x1xf32>
    %cst_61 = arith.constant 3.200000e+01 : f32
    %197 = vector.broadcast %cst_61 : f32 to vector<8x1xf32>
    %198 = arith.divf %196, %197 : vector<8x1xf32>
    %199 = vector.broadcast %198 : vector<8x1xf32> to vector<8x32xf32>
    %200 = arith.subf %194, %199 : vector<8x32xf32>
    %201 = vector.broadcast %198 : vector<8x1xf32> to vector<8x32xf32>
    %202 = arith.subf %194, %201 : vector<8x32xf32>
    %203 = arith.mulf %200, %202 : vector<8x32xf32>
    %cst_62 = arith.constant dense<0.000000e+00> : vector<8xf32>
    %204 = vector.multi_reduction <add>, %203, %cst_62 [1] : vector<8x32xf32> to vector<8xf32>
    %205 = vector.shape_cast %204 : vector<8xf32> to vector<8x1xf32>
    %cst_63 = arith.constant 3.200000e+01 : f32
    %206 = vector.broadcast %cst_63 : f32 to vector<8x1xf32>
    %207 = arith.divf %205, %206 : vector<8x1xf32>
    %208 = vector.broadcast %198 : vector<8x1xf32> to vector<8x32xf32>
    %209 = arith.subf %194, %208 : vector<8x32xf32>
    %cst_64 = arith.constant 9.99999974E-6 : f32
    %210 = vector.broadcast %cst_64 : f32 to vector<8x1xf32>
    %211 = arith.addf %207, %210 : vector<8x1xf32>
    %212 = math.rsqrt %211 : vector<8x1xf32>
    %213 = vector.broadcast %212 : vector<8x1xf32> to vector<8x32xf32>
    %214 = arith.mulf %209, %213 : vector<8x32xf32>
    %c0_65 = arith.constant 0 : index
    %c0_66 = arith.constant 0 : index
    %215 = vector.load %arg4[%c0_65, %c0_66] : memref<1x32xf32, #tpu.memory_space<vmem>>, vector<1x32xf32>
    %216 = vector.broadcast %215 : vector<1x32xf32> to vector<8x32xf32>
    %217 = arith.mulf %214, %216 : vector<8x32xf32>
    %c0_67 = arith.constant 0 : index
    %c0_68 = arith.constant 0 : index
    %218 = vector.load %arg5[%c0_67, %c0_68] : memref<1x32xf32, #tpu.memory_space<vmem>>, vector<1x32xf32>
    %219 = vector.broadcast %218 : vector<1x32xf32> to vector<8x32xf32>
    %220 = arith.addf %217, %219 : vector<8x32xf32>
    %221 = vector.extract_strided_slice %220 {offsets = [0, 0], sizes = [2, 32], strides = [1, 1]} : vector<8x32xf32> to vector<2x32xf32>
    %222 = vector.extract_strided_slice %220 {offsets = [2, 0], sizes = [2, 32], strides = [1, 1]} : vector<8x32xf32> to vector<2x32xf32>
    %223 = vector.extract_strided_slice %220 {offsets = [4, 0], sizes = [2, 32], strides = [1, 1]} : vector<8x32xf32> to vector<2x32xf32>
    %224 = vector.extract_strided_slice %220 {offsets = [6, 0], sizes = [2, 32], strides = [1, 1]} : vector<8x32xf32> to vector<2x32xf32>
    %225 = arith.addf %221, %222 : vector<2x32xf32>
    %226 = tpu.concatenate %221, %225 in 1 : vector<2x32xf32>, vector<2x32xf32> -> vector<2x64xf32>
    %227 = arith.addf %223, %224 : vector<2x32xf32>
    %228 = tpu.concatenate %223, %227 in 1 : vector<2x32xf32>, vector<2x32xf32> -> vector<2x64xf32>
    %c0_69 = arith.constant 0 : index
    %c0_70 = arith.constant 0 : index
    %229 = vector.load %arg10[%c0_69, %c0_70] : memref<1x256xf32, #tpu.memory_space<vmem>>, vector<1x256xf32>
    %230 = vector.shape_cast %229 : vector<1x256xf32> to vector<1x256xf32>
    %231 = vector.broadcast %230 : vector<1x256xf32> to vector<2x256xf32>
    %c0_71 = arith.constant 0 : index
    %c0_72 = arith.constant 0 : index
    %232 = vector.load %arg6[%c0_71, %c0_72] : memref<64x256xf32, #tpu.memory_space<vmem>>, vector<64x256xf32>
    %cst_73 = arith.constant dense<0.000000e+00> : vector<2x256xf32>
    %233 = tpu.matmul %226, %232, %cst_73 {dimension_numbers = #tpu.dot_dimension_numbers<[1], [0], [0], [1], [0, 0, 1, 1], [], []>} : vector<2x64xf32>, vector<64x256xf32>, vector<2x256xf32> -> vector<2x256xf32>
    %234 = arith.addf %11, %233 : vector<2x256xf32>
    %235 = arith.negf %234 : vector<2x256xf32>
    %236 = math.exp %235 : vector<2x256xf32>
    %cst_74 = arith.constant 1.000000e+00 : f32
    %237 = vector.broadcast %cst_74 : f32 to vector<2x256xf32>
    %238 = arith.addf %237, %236 : vector<2x256xf32>
    %239 = arith.divf %237, %238 : vector<2x256xf32>
    %240 = vector.extract_strided_slice %239 {offsets = [0, 0], sizes = [2, 64], strides = [1, 1]} : vector<2x256xf32> to vector<2x64xf32>
    %241 = vector.extract_strided_slice %239 {offsets = [0, 64], sizes = [2, 64], strides = [1, 1]} : vector<2x256xf32> to vector<2x64xf32>
    %242 = vector.extract_strided_slice %239 {offsets = [0, 128], sizes = [2, 64], strides = [1, 1]} : vector<2x256xf32> to vector<2x64xf32>
    %cst_75 = arith.constant 2.000000e+00 : f32
    %243 = vector.broadcast %cst_75 : f32 to vector<2x64xf32>
    %244 = arith.mulf %243, %242 : vector<2x64xf32>
    %cst_76 = arith.constant 1.000000e+00 : f32
    %245 = vector.broadcast %cst_76 : f32 to vector<2x64xf32>
    %246 = arith.subf %244, %245 : vector<2x64xf32>
    %247 = vector.extract_strided_slice %239 {offsets = [0, 192], sizes = [2, 64], strides = [1, 1]} : vector<2x256xf32> to vector<2x64xf32>
    %248 = arith.mulf %241, %228 : vector<2x64xf32>
    %249 = arith.mulf %240, %246 : vector<2x64xf32>
    %250 = arith.addf %248, %249 : vector<2x64xf32>
    %251 = math.tanh %250 : vector<2x64xf32>
    %252 = arith.mulf %247, %251 : vector<2x64xf32>
    %c0_77 = arith.constant 0 : index
    %c0_78 = arith.constant 0 : index
    %253 = vector.load %arg9[%c0_77, %c0_78] : memref<64x256xf32, #tpu.memory_space<vmem>>, vector<64x256xf32>
    %cst_79 = arith.constant dense<0.000000e+00> : vector<2x256xf32>
    %254 = tpu.matmul %252, %253, %cst_79 {dimension_numbers = #tpu.dot_dimension_numbers<[1], [0], [0], [1], [0, 0, 1, 1], [], []>} : vector<2x64xf32>, vector<64x256xf32>, vector<2x256xf32> -> vector<2x256xf32>
    %255 = arith.addf %231, %254 : vector<2x256xf32>
    %256 = arith.negf %255 : vector<2x256xf32>
    %257 = math.exp %256 : vector<2x256xf32>
    %cst_80 = arith.constant 1.000000e+00 : f32
    %258 = vector.broadcast %cst_80 : f32 to vector<2x256xf32>
    %259 = arith.addf %258, %257 : vector<2x256xf32>
    %260 = arith.divf %258, %259 : vector<2x256xf32>
    %261 = vector.extract_strided_slice %260 {offsets = [0, 0], sizes = [2, 64], strides = [1, 1]} : vector<2x256xf32> to vector<2x64xf32>
    %262 = vector.extract_strided_slice %260 {offsets = [0, 64], sizes = [2, 64], strides = [1, 1]} : vector<2x256xf32> to vector<2x64xf32>
    %263 = vector.extract_strided_slice %260 {offsets = [0, 128], sizes = [2, 64], strides = [1, 1]} : vector<2x256xf32> to vector<2x64xf32>
    %cst_81 = arith.constant 2.000000e+00 : f32
    %264 = vector.broadcast %cst_81 : f32 to vector<2x64xf32>
    %265 = arith.mulf %264, %263 : vector<2x64xf32>
    %cst_82 = arith.constant 1.000000e+00 : f32
    %266 = vector.broadcast %cst_82 : f32 to vector<2x64xf32>
    %267 = arith.subf %265, %266 : vector<2x64xf32>
    %268 = vector.extract_strided_slice %260 {offsets = [0, 192], sizes = [2, 64], strides = [1, 1]} : vector<2x256xf32> to vector<2x64xf32>
    %269 = arith.mulf %262, %250 : vector<2x64xf32>
    %270 = arith.mulf %261, %267 : vector<2x64xf32>
    %271 = arith.addf %269, %270 : vector<2x64xf32>
    %272 = math.tanh %271 : vector<2x64xf32>
    %273 = arith.mulf %268, %272 : vector<2x64xf32>
    %c0_83 = arith.constant 0 : index
    %c0_84 = arith.constant 0 : index
    %274 = vector.load %arg9[%c0_83, %c0_84] : memref<64x256xf32, #tpu.memory_space<vmem>>, vector<64x256xf32>
    %cst_85 = arith.constant dense<0.000000e+00> : vector<2x256xf32>
    %275 = tpu.matmul %273, %274, %cst_85 {dimension_numbers = #tpu.dot_dimension_numbers<[1], [0], [0], [1], [0, 0, 1, 1], [], []>} : vector<2x64xf32>, vector<64x256xf32>, vector<2x256xf32> -> vector<2x256xf32>
    %276 = arith.addf %231, %275 : vector<2x256xf32>
    %277 = arith.negf %276 : vector<2x256xf32>
    %278 = math.exp %277 : vector<2x256xf32>
    %cst_86 = arith.constant 1.000000e+00 : f32
    %279 = vector.broadcast %cst_86 : f32 to vector<2x256xf32>
    %280 = arith.addf %279, %278 : vector<2x256xf32>
    %281 = arith.divf %279, %280 : vector<2x256xf32>
    %282 = vector.extract_strided_slice %281 {offsets = [0, 0], sizes = [2, 64], strides = [1, 1]} : vector<2x256xf32> to vector<2x64xf32>
    %283 = vector.extract_strided_slice %281 {offsets = [0, 64], sizes = [2, 64], strides = [1, 1]} : vector<2x256xf32> to vector<2x64xf32>
    %284 = vector.extract_strided_slice %281 {offsets = [0, 128], sizes = [2, 64], strides = [1, 1]} : vector<2x256xf32> to vector<2x64xf32>
    %cst_87 = arith.constant 2.000000e+00 : f32
    %285 = vector.broadcast %cst_87 : f32 to vector<2x64xf32>
    %286 = arith.mulf %285, %284 : vector<2x64xf32>
    %cst_88 = arith.constant 1.000000e+00 : f32
    %287 = vector.broadcast %cst_88 : f32 to vector<2x64xf32>
    %288 = arith.subf %286, %287 : vector<2x64xf32>
    %289 = vector.extract_strided_slice %281 {offsets = [0, 192], sizes = [2, 64], strides = [1, 1]} : vector<2x256xf32> to vector<2x64xf32>
    %290 = arith.mulf %283, %271 : vector<2x64xf32>
    %291 = arith.mulf %282, %288 : vector<2x64xf32>
    %292 = arith.addf %290, %291 : vector<2x64xf32>
    %293 = math.tanh %292 : vector<2x64xf32>
    %294 = arith.mulf %289, %293 : vector<2x64xf32>
    %c0_89 = arith.constant 0 : index
    %c0_90 = arith.constant 0 : index
    %295 = vector.load %arg9[%c0_89, %c0_90] : memref<64x256xf32, #tpu.memory_space<vmem>>, vector<64x256xf32>
    %cst_91 = arith.constant dense<0.000000e+00> : vector<2x256xf32>
    %296 = tpu.matmul %294, %295, %cst_91 {dimension_numbers = #tpu.dot_dimension_numbers<[1], [0], [0], [1], [0, 0, 1, 1], [], []>} : vector<2x64xf32>, vector<64x256xf32>, vector<2x256xf32> -> vector<2x256xf32>
    %297 = arith.addf %231, %296 : vector<2x256xf32>
    %298 = arith.negf %297 : vector<2x256xf32>
    %299 = math.exp %298 : vector<2x256xf32>
    %cst_92 = arith.constant 1.000000e+00 : f32
    %300 = vector.broadcast %cst_92 : f32 to vector<2x256xf32>
    %301 = arith.addf %300, %299 : vector<2x256xf32>
    %302 = arith.divf %300, %301 : vector<2x256xf32>
    %303 = vector.extract_strided_slice %302 {offsets = [0, 0], sizes = [2, 64], strides = [1, 1]} : vector<2x256xf32> to vector<2x64xf32>
    %304 = vector.extract_strided_slice %302 {offsets = [0, 64], sizes = [2, 64], strides = [1, 1]} : vector<2x256xf32> to vector<2x64xf32>
    %305 = vector.extract_strided_slice %302 {offsets = [0, 128], sizes = [2, 64], strides = [1, 1]} : vector<2x256xf32> to vector<2x64xf32>
    %cst_93 = arith.constant 2.000000e+00 : f32
    %306 = vector.broadcast %cst_93 : f32 to vector<2x64xf32>
    %307 = arith.mulf %306, %305 : vector<2x64xf32>
    %cst_94 = arith.constant 1.000000e+00 : f32
    %308 = vector.broadcast %cst_94 : f32 to vector<2x64xf32>
    %309 = arith.subf %307, %308 : vector<2x64xf32>
    %310 = vector.extract_strided_slice %302 {offsets = [0, 192], sizes = [2, 64], strides = [1, 1]} : vector<2x256xf32> to vector<2x64xf32>
    %311 = arith.mulf %304, %292 : vector<2x64xf32>
    %312 = arith.mulf %303, %309 : vector<2x64xf32>
    %313 = arith.addf %311, %312 : vector<2x64xf32>
    %314 = math.tanh %313 : vector<2x64xf32>
    %315 = arith.mulf %310, %314 : vector<2x64xf32>
    %c0_95 = arith.constant 0 : index
    %c0_96 = arith.constant 0 : index
    %316 = vector.load %arg9[%c0_95, %c0_96] : memref<64x256xf32, #tpu.memory_space<vmem>>, vector<64x256xf32>
    %cst_97 = arith.constant dense<0.000000e+00> : vector<2x256xf32>
    %317 = tpu.matmul %315, %316, %cst_97 {dimension_numbers = #tpu.dot_dimension_numbers<[1], [0], [0], [1], [0, 0, 1, 1], [], []>} : vector<2x64xf32>, vector<64x256xf32>, vector<2x256xf32> -> vector<2x256xf32>
    %318 = arith.addf %231, %317 : vector<2x256xf32>
    %319 = arith.negf %318 : vector<2x256xf32>
    %320 = math.exp %319 : vector<2x256xf32>
    %cst_98 = arith.constant 1.000000e+00 : f32
    %321 = vector.broadcast %cst_98 : f32 to vector<2x256xf32>
    %322 = arith.addf %321, %320 : vector<2x256xf32>
    %323 = arith.divf %321, %322 : vector<2x256xf32>
    %324 = vector.extract_strided_slice %323 {offsets = [0, 0], sizes = [2, 64], strides = [1, 1]} : vector<2x256xf32> to vector<2x64xf32>
    %325 = vector.extract_strided_slice %323 {offsets = [0, 64], sizes = [2, 64], strides = [1, 1]} : vector<2x256xf32> to vector<2x64xf32>
    %326 = vector.extract_strided_slice %323 {offsets = [0, 128], sizes = [2, 64], strides = [1, 1]} : vector<2x256xf32> to vector<2x64xf32>
    %cst_99 = arith.constant 2.000000e+00 : f32
    %327 = vector.broadcast %cst_99 : f32 to vector<2x64xf32>
    %328 = arith.mulf %327, %326 : vector<2x64xf32>
    %cst_100 = arith.constant 1.000000e+00 : f32
    %329 = vector.broadcast %cst_100 : f32 to vector<2x64xf32>
    %330 = arith.subf %328, %329 : vector<2x64xf32>
    %331 = vector.extract_strided_slice %323 {offsets = [0, 192], sizes = [2, 64], strides = [1, 1]} : vector<2x256xf32> to vector<2x64xf32>
    %332 = arith.mulf %325, %313 : vector<2x64xf32>
    %333 = arith.mulf %324, %330 : vector<2x64xf32>
    %334 = arith.addf %332, %333 : vector<2x64xf32>
    %335 = math.tanh %334 : vector<2x64xf32>
    %336 = arith.mulf %331, %335 : vector<2x64xf32>
    %c0_101 = arith.constant 0 : index
    %c0_102 = arith.constant 0 : index
    %337 = vector.load %arg9[%c0_101, %c0_102] : memref<64x256xf32, #tpu.memory_space<vmem>>, vector<64x256xf32>
    %cst_103 = arith.constant dense<0.000000e+00> : vector<2x256xf32>
    %338 = tpu.matmul %336, %337, %cst_103 {dimension_numbers = #tpu.dot_dimension_numbers<[1], [0], [0], [1], [0, 0, 1, 1], [], []>} : vector<2x64xf32>, vector<64x256xf32>, vector<2x256xf32> -> vector<2x256xf32>
    %339 = arith.addf %231, %338 : vector<2x256xf32>
    %340 = arith.negf %339 : vector<2x256xf32>
    %341 = math.exp %340 : vector<2x256xf32>
    %cst_104 = arith.constant 1.000000e+00 : f32
    %342 = vector.broadcast %cst_104 : f32 to vector<2x256xf32>
    %343 = arith.addf %342, %341 : vector<2x256xf32>
    %344 = arith.divf %342, %343 : vector<2x256xf32>
    %345 = vector.extract_strided_slice %344 {offsets = [0, 0], sizes = [2, 64], strides = [1, 1]} : vector<2x256xf32> to vector<2x64xf32>
    %346 = vector.extract_strided_slice %344 {offsets = [0, 64], sizes = [2, 64], strides = [1, 1]} : vector<2x256xf32> to vector<2x64xf32>
    %347 = vector.extract_strided_slice %344 {offsets = [0, 128], sizes = [2, 64], strides = [1, 1]} : vector<2x256xf32> to vector<2x64xf32>
    %cst_105 = arith.constant 2.000000e+00 : f32
    %348 = vector.broadcast %cst_105 : f32 to vector<2x64xf32>
    %349 = arith.mulf %348, %347 : vector<2x64xf32>
    %cst_106 = arith.constant 1.000000e+00 : f32
    %350 = vector.broadcast %cst_106 : f32 to vector<2x64xf32>
    %351 = arith.subf %349, %350 : vector<2x64xf32>
    %352 = vector.extract_strided_slice %344 {offsets = [0, 192], sizes = [2, 64], strides = [1, 1]} : vector<2x256xf32> to vector<2x64xf32>
    %353 = arith.mulf %346, %334 : vector<2x64xf32>
    %354 = arith.mulf %345, %351 : vector<2x64xf32>
    %355 = arith.addf %353, %354 : vector<2x64xf32>
    %356 = math.tanh %355 : vector<2x64xf32>
    %357 = arith.mulf %352, %356 : vector<2x64xf32>
    %c0_107 = arith.constant 0 : index
    %c0_108 = arith.constant 0 : index
    %358 = vector.load %arg9[%c0_107, %c0_108] : memref<64x256xf32, #tpu.memory_space<vmem>>, vector<64x256xf32>
    %cst_109 = arith.constant dense<0.000000e+00> : vector<2x256xf32>
    %359 = tpu.matmul %357, %358, %cst_109 {dimension_numbers = #tpu.dot_dimension_numbers<[1], [0], [0], [1], [0, 0, 1, 1], [], []>} : vector<2x64xf32>, vector<64x256xf32>, vector<2x256xf32> -> vector<2x256xf32>
    %360 = arith.addf %231, %359 : vector<2x256xf32>
    %361 = arith.negf %360 : vector<2x256xf32>
    %362 = math.exp %361 : vector<2x256xf32>
    %cst_110 = arith.constant 1.000000e+00 : f32
    %363 = vector.broadcast %cst_110 : f32 to vector<2x256xf32>
    %364 = arith.addf %363, %362 : vector<2x256xf32>
    %365 = arith.divf %363, %364 : vector<2x256xf32>
    %366 = vector.extract_strided_slice %365 {offsets = [0, 0], sizes = [2, 64], strides = [1, 1]} : vector<2x256xf32> to vector<2x64xf32>
    %367 = vector.extract_strided_slice %365 {offsets = [0, 64], sizes = [2, 64], strides = [1, 1]} : vector<2x256xf32> to vector<2x64xf32>
    %368 = vector.extract_strided_slice %365 {offsets = [0, 128], sizes = [2, 64], strides = [1, 1]} : vector<2x256xf32> to vector<2x64xf32>
    %cst_111 = arith.constant 2.000000e+00 : f32
    %369 = vector.broadcast %cst_111 : f32 to vector<2x64xf32>
    %370 = arith.mulf %369, %368 : vector<2x64xf32>
    %cst_112 = arith.constant 1.000000e+00 : f32
    %371 = vector.broadcast %cst_112 : f32 to vector<2x64xf32>
    %372 = arith.subf %370, %371 : vector<2x64xf32>
    %373 = vector.extract_strided_slice %365 {offsets = [0, 192], sizes = [2, 64], strides = [1, 1]} : vector<2x256xf32> to vector<2x64xf32>
    %374 = arith.mulf %367, %355 : vector<2x64xf32>
    %375 = arith.mulf %366, %372 : vector<2x64xf32>
    %376 = arith.addf %374, %375 : vector<2x64xf32>
    %377 = math.tanh %376 : vector<2x64xf32>
    %378 = arith.mulf %373, %377 : vector<2x64xf32>
    %c0_113 = arith.constant 0 : index
    %c0_114 = arith.constant 0 : index
    %379 = vector.load %arg9[%c0_113, %c0_114] : memref<64x256xf32, #tpu.memory_space<vmem>>, vector<64x256xf32>
    %cst_115 = arith.constant dense<0.000000e+00> : vector<2x256xf32>
    %380 = tpu.matmul %378, %379, %cst_115 {dimension_numbers = #tpu.dot_dimension_numbers<[1], [0], [0], [1], [0, 0, 1, 1], [], []>} : vector<2x64xf32>, vector<64x256xf32>, vector<2x256xf32> -> vector<2x256xf32>
    %381 = arith.addf %231, %380 : vector<2x256xf32>
    %382 = arith.negf %381 : vector<2x256xf32>
    %383 = math.exp %382 : vector<2x256xf32>
    %cst_116 = arith.constant 1.000000e+00 : f32
    %384 = vector.broadcast %cst_116 : f32 to vector<2x256xf32>
    %385 = arith.addf %384, %383 : vector<2x256xf32>
    %386 = arith.divf %384, %385 : vector<2x256xf32>
    %387 = vector.extract_strided_slice %386 {offsets = [0, 0], sizes = [2, 64], strides = [1, 1]} : vector<2x256xf32> to vector<2x64xf32>
    %388 = vector.extract_strided_slice %386 {offsets = [0, 64], sizes = [2, 64], strides = [1, 1]} : vector<2x256xf32> to vector<2x64xf32>
    %389 = vector.extract_strided_slice %386 {offsets = [0, 128], sizes = [2, 64], strides = [1, 1]} : vector<2x256xf32> to vector<2x64xf32>
    %cst_117 = arith.constant 2.000000e+00 : f32
    %390 = vector.broadcast %cst_117 : f32 to vector<2x64xf32>
    %391 = arith.mulf %390, %389 : vector<2x64xf32>
    %cst_118 = arith.constant 1.000000e+00 : f32
    %392 = vector.broadcast %cst_118 : f32 to vector<2x64xf32>
    %393 = arith.subf %391, %392 : vector<2x64xf32>
    %394 = vector.extract_strided_slice %386 {offsets = [0, 192], sizes = [2, 64], strides = [1, 1]} : vector<2x256xf32> to vector<2x64xf32>
    %395 = arith.mulf %388, %376 : vector<2x64xf32>
    %396 = arith.mulf %387, %393 : vector<2x64xf32>
    %397 = arith.addf %395, %396 : vector<2x64xf32>
    %398 = math.tanh %397 : vector<2x64xf32>
    %399 = arith.mulf %394, %398 : vector<2x64xf32>
    %400 = tpu.concatenate %252, %273, %294, %315, %336, %357, %378, %399 in 0 : vector<2x64xf32>, vector<2x64xf32>, vector<2x64xf32>, vector<2x64xf32>, vector<2x64xf32>, vector<2x64xf32>, vector<2x64xf32>, vector<2x64xf32> -> vector<16x64xf32>
    %c0_119 = arith.constant 0 : index
    %c0_120 = arith.constant 0 : index
    %401 = vector.load %arg11[%c0_119, %c0_120] : memref<64x4xf32, #tpu.memory_space<vmem>>, vector<64x4xf32>
    %cst_121 = arith.constant dense<0.000000e+00> : vector<16x4xf32>
    %402 = tpu.matmul %400, %401, %cst_121 {dimension_numbers = #tpu.dot_dimension_numbers<[1], [0], [0], [1], [0, 0, 1, 1], [], []>} : vector<16x64xf32>, vector<64x4xf32>, vector<16x4xf32> -> vector<16x4xf32>
    %c0_122 = arith.constant 0 : index
    %c0_123 = arith.constant 0 : index
    %403 = vector.load %arg12[%c0_122, %c0_123] : memref<1x4xf32, #tpu.memory_space<vmem>>, vector<1x4xf32>
    %404 = vector.broadcast %403 : vector<1x4xf32> to vector<16x4xf32>
    %405 = arith.addf %402, %404 : vector<16x4xf32>
    %c0_124 = arith.constant 0 : index
    %c0_125 = arith.constant 0 : index
    %406 = vector.load %arg13[%c0_124, %c0_125] : memref<16x4xf32, #tpu.memory_space<vmem>>, vector<16x4xf32>
    tpu.vector_store %arg13[%c0_124, %c0_125], %405 {strides = array<i32>} : memref<16x4xf32, #tpu.memory_space<vmem>>, vector<16x4xf32>,
    return
  }
}

</mosaic_0001>

<llo_original>
// kernel: tpu_custom_call.1
$region0: #{tpu_custom_call.1}
  #allocation0 [shape = 'u32[]', space=smem, size = 0x4, offset = 0x4, fixed_abs, tag = 'smem constant byte address 0x4 - core index']
  #allocation1 [shape = 'u32[144,128]{1,0:T(1,128)}', space=vmem, size = 0x12000, scoped, tag = 'internal scratch']
  %s0 = inlined_call_operand.vmem [shape: f32[16,4], index: 0, kind: input, shape index: {}]
  %s1 = inlined_call_operand.vmem [shape: f32[4,256], index: 1, kind: input, shape index: {}]
  %s2 = inlined_call_operand.hbm [shape: f32[64,256], index: 2, kind: input, shape index: {}]
  %s3 = inlined_call_operand.vmem [shape: f32[1,256], index: 3, kind: input, shape index: {}]
  %s4 = inlined_call_operand.vmem [shape: f32[1,32], index: 4, kind: input, shape index: {}]
  %s5 = inlined_call_operand.vmem [shape: f32[1,32], index: 5, kind: input, shape index: {}]
  %s6 = inlined_call_operand.hbm [shape: f32[64,256], index: 6, kind: input, shape index: {}]
  %s7 = inlined_call_operand.vmem [shape: f32[4,256], index: 7, kind: input, shape index: {}]
  %s8 = inlined_call_operand.vmem [shape: f32[1,256], index: 8, kind: input, shape index: {}]
  %s9 = inlined_call_operand.hbm [shape: f32[64,256], index: 9, kind: input, shape index: {}]
  %s10 = inlined_call_operand.vmem [shape: f32[1,256], index: 10, kind: input, shape index: {}]
  %s11 = inlined_call_operand.vmem [shape: f32[64,4], index: 11, kind: input, shape index: {}]
  %s12 = inlined_call_operand.vmem [shape: f32[1,4], index: 12, kind: input, shape index: {}]
  %s13 = inlined_call_operand.vmem [shape: f32[16,4], index: 13, kind: output, shape index: {}]
  %s14 = sld [smem:[#allocation0]]
  $region74: #{tpu_custom_call.1} parent=0
    _
  %s16 = ssub.s32 1, %s14
  %s17 = scalar_select 0, %s16, %s14
  $region1: #{tpu_custom_call.1} parent=0
    #allocation2 [shape = 'u8[65536]{0}', space=vmem, size = 0x10000, scoped, tag = 'input window, operand 2, single buffered']
    #allocation3 [shape = 's32[1]{0}', space=sflag, size = 0x4, scoped, tag = 'scoped memory for tpu_custom_call.1']
    #allocation4 [shape = 'u8[65536]{0}', space=vmem, size = 0x10000, scoped, tag = 'input window, operand 6, single buffered']
    #allocation5 [shape = 's32[1]{0}', space=sflag, size = 0x4, scoped, tag = 'scoped memory for tpu_custom_call.1']
    #allocation6 [shape = 'u8[65536]{0}', space=vmem, size = 0x10000, scoped, tag = 'input window, operand 9, single buffered']
    %18 = vsyncpa [#allocation3], 0
    %19 = vsyncpa [#allocation5], 0
    // Predicated region
    $region2: #{tpu_custom_call.1} parent=1 // pred_check
      _
    $region3: #{tpu_custom_call.1} parent=1 // pred_check_branch
      %21 = sbr.rel (0) target = $region5
    $region4: #{tpu_custom_call.1} parent=1 // pred_region
      _
    $region5: #{tpu_custom_call.1} parent=1 // pred_fallthru
      _
    // Predicated region
    $region6: #{tpu_custom_call.1} parent=1 // pred_check
      _
    $region7: #{tpu_custom_call.1} parent=1 // pred_check_branch
      %23 = sbr.rel (0) target = $region9
    $region8: #{tpu_custom_call.1} parent=1 // pred_region
      _
    $region9: #{tpu_custom_call.1} parent=1 // pred_fallthru
      _
    // Predicated region
    $region10: #{tpu_custom_call.1} parent=1 // pred_check
      _
    $region11: #{tpu_custom_call.1} parent=1 // pred_check_branch
      %25 = sbr.rel (0) target = $region13
    $region12: #{tpu_custom_call.1} parent=1 // pred_region
      %s27 = ssub.s32 2048, 2048
      %28 = vsyncadd [#allocation3], %s27
      %s29 = sshll.u32 [#allocation2], 4
      %s30 = int_to_ptr.vmem [resolvable:$true] %s29
      %35 = dma.hbm_to_vmem [thread:$0]  %s2, 2048, %s30, [#allocation3], 256, 256, 16
    $region13: #{tpu_custom_call.1} parent=1 // pred_fallthru
      _
    // Predicated region
    $region14: #{tpu_custom_call.1} parent=1 // pred_check
      _
    $region15: #{tpu_custom_call.1} parent=1 // pred_check_branch
      %37 = sbr.rel (0) target = $region17
    $region16: #{tpu_custom_call.1} parent=1 // pred_region
      _
    $region17: #{tpu_custom_call.1} parent=1 // pred_fallthru
      _
    // Predicated region
    $region18: #{tpu_custom_call.1} parent=1 // pred_check
      _
    $region19: #{tpu_custom_call.1} parent=1 // pred_check_branch
      %39 = sbr.rel (0) target = $region21
    $region20: #{tpu_custom_call.1} parent=1 // pred_region
      _
    $region21: #{tpu_custom_call.1} parent=1 // pred_fallthru
      _
    // Predicated region
    $region22: #{tpu_custom_call.1} parent=1 // pred_check
      _
    $region23: #{tpu_custom_call.1} parent=1 // pred_check_branch
      %41 = sbr.rel (0) target = $region25
    $region24: #{tpu_custom_call.1} parent=1 // pred_region
      _
    $region25: #{tpu_custom_call.1} parent=1 // pred_fallthru
      _
    // Predicated region
    $region26: #{tpu_custom_call.1} parent=1 // pred_check
      _
    $region27: #{tpu_custom_call.1} parent=1 // pred_check_branch
      %43 = sbr.rel (0) target = $region29
    $region28: #{tpu_custom_call.1} parent=1 // pred_region
      %s45 = ssub.s32 2048, 2048
      %46 = vsyncadd [#allocation5], %s45
      %s47 = sshll.u32 [#allocation4], 4
      %s48 = int_to_ptr.vmem [resolvable:$true] %s47
      %53 = dma.hbm_to_vmem [thread:$0]  %s6, 2048, %s48, [#allocation5], 256, 256, 16
    $region29: #{tpu_custom_call.1} parent=1 // pred_fallthru
      _
    // Predicated region
    $region30: #{tpu_custom_call.1} parent=1 // pred_check
      _
    $region31: #{tpu_custom_call.1} parent=1 // pred_check_branch
      %55 = sbr.rel (0) target = $region33
    $region32: #{tpu_custom_call.1} parent=1 // pred_region
      _
    $region33: #{tpu_custom_call.1} parent=1 // pred_fallthru
      _
    // Predicated region
    $region34: #{tpu_custom_call.1} parent=1 // pred_check
      _
    $region35: #{tpu_custom_call.1} parent=1 // pred_check_branch
      %57 = sbr.rel (0) target = $region37
    $region36: #{tpu_custom_call.1} parent=1 // pred_region
      _
    $region37: #{tpu_custom_call.1} parent=1 // pred_fallthru
      _
    // Predicated region
    $region38: #{tpu_custom_call.1} parent=1 // pred_check
      _
    $region39: #{tpu_custom_call.1} parent=1 // pred_check_branch
      %59 = sbr.rel (0) target = $region41
    $region40: #{tpu_custom_call.1} parent=1 // pred_region
      %s61 = ssub.s32 2048, 2048
      %62 = vsyncadd [#allocation5], %s61
      %s63 = sshll.u32 [#allocation6], 4
      %s64 = int_to_ptr.vmem [resolvable:$true] %s63
      %69 = dma.hbm_to_vmem [thread:$0]  %s9, 2048, %s64, [#allocation5], 256, 256, 16
    $region41: #{tpu_custom_call.1} parent=1 // pred_fallthru
      _
    // Predicated region
    $region42: #{tpu_custom_call.1} parent=1 // pred_check
      _
    $region43: #{tpu_custom_call.1} parent=1 // pred_check_branch
      %71 = sbr.rel (0) target = $region45
    $region44: #{tpu_custom_call.1} parent=1 // pred_region
      _
    $region45: #{tpu_custom_call.1} parent=1 // pred_fallthru
      _
    // Predicated region
    $region46: #{tpu_custom_call.1} parent=1 // pred_check
      _
    $region47: #{tpu_custom_call.1} parent=1 // pred_check_branch
      %73 = sbr.rel (0) target = $region49
    $region48: #{tpu_custom_call.1} parent=1 // pred_region
      _
    $region49: #{tpu_custom_call.1} parent=1 // pred_fallthru
      _
    // Predicated region
    $region50: #{tpu_custom_call.1} parent=1 // pred_check
      _
    $region51: #{tpu_custom_call.1} parent=1 // pred_check_branch
      %75 = sbr.rel (0) target = $region53
    $region52: #{tpu_custom_call.1} parent=1 // pred_region
      _
    $region53: #{tpu_custom_call.1} parent=1 // pred_fallthru
      _
    // Predicated region
    $region54: #{tpu_custom_call.1} parent=1 // pred_check
      _
    $region55: #{tpu_custom_call.1} parent=1 // pred_check_branch
      %77 = sbr.rel (0) target = $region57
    $region56: #{tpu_custom_call.1} parent=1 // pred_region
      %78 = dma.done [#allocation3], 2048
    $region57: #{tpu_custom_call.1} parent=1 // pred_fallthru
      _
    // Predicated region
    $region58: #{tpu_custom_call.1} parent=1 // pred_check
      _
    $region59: #{tpu_custom_call.1} parent=1 // pred_check_branch
      %80 = sbr.rel (0) target = $region61
    $region60: #{tpu_custom_call.1} parent=1 // pred_region
      %81 = dma.done [#allocation5], 2048
    $region61: #{tpu_custom_call.1} parent=1 // pred_fallthru
      _
    // Predicated region
    $region62: #{tpu_custom_call.1} parent=1 // pred_check
      _
    $region63: #{tpu_custom_call.1} parent=1 // pred_check_branch
      %83 = sbr.rel (0) target = $region65
    $region64: #{tpu_custom_call.1} parent=1 // pred_region
      %84 = dma.done [#allocation5], 2048
    $region65: #{tpu_custom_call.1} parent=1 // pred_fallthru
      _
    %v85 = vld [vmem:[%s0] sm:$0xff]
    %v86 = vld [vmem:[%s0 + $0x8] sm:$0xff]
    %v87 = vld [vmem:[%s1] sm:$0xff]
    %v88 = vld [vmem:[%s3] sm:$0x3]
    %v90 = vlaneseq
    %v91 = vshrl.u32 %v90, 7
    %v92 = vsub.s32 0, %v91
    %v93 = vrot.slane %v88, %v92
    %v94 = vlaneseq
    %v95 = vshrl.u32 %v94, 7
    %v96 = vsub.s32 1, %v95
    %v97 = vrot.slane %v88, %v96
    %v101 = vcombine.high %v87, %v87
    %vm102 = vcmask 31744
    %v104 = vsel %vm102, %v85, 0
    %v107 = vsel %vm102, %v86, 0
    %vm109 = vcmask 1043456
    %v110 = vsel %vm109, %v87, 0
    %v112 = vsel %vm109, %v101, 0
    %114 = vmatprep.subr.mxu0 0.0
    %115 = vmatpush1.msra.mxu0 0.0
    %116 = vmatprep.subr.mxu0 0.0
    %117 = vmatpush1.msra.mxu0 0.0
    %118 = vmatprep.subr.mxu0 0.0
    %119 = vmatpush1.msra.mxu0 0.0
    %120 = vmatprep.subr.mxu0 0.0
    %121 = vmatpush1.msra.mxu0 0.0
    %122 = vmatprep.subr.mxu0 0.0
    %123 = vmatpush1.msra.mxu0 0.0
    %124 = vmatprep.subr.mxu0 0.0
    %125 = vmatpush1.msra.mxu0 0.0
    %126 = vmatprep.subr.mxu0 0.0
    %127 = vmatpush1.msra.mxu0 0.0
    %128 = vmatprep.subr.mxu0 0.0
    %129 = vmatpush1.msra.mxu0 0.0
    %130 = vmatprep.subr.mxu0 0.0
    %131 = vmatpush1.msra.mxu0 0.0
    %132 = vmatprep.subr.mxu0 0.0
    %133 = vmatpush1.msra.mxu0 0.0
    %134 = vmatprep.subr.mxu0 0.0
    %135 = vmatpush1.msra.mxu0 0.0
    %136 = vmatprep.subr.mxu0 0.0
    %137 = vmatpush1.msra.mxu0 0.0
    %138 = vmatprep.subr.mxu0 0.0
    %139 = vmatpush1.msra.mxu0 0.0
    %140 = vmatprep.subr.mxu0 0.0
    %141 = vmatpush1.msra.mxu0 0.0
    %142 = vmatprep.subr.mxu0 0.0
    %143 = vmatpush1.msra.mxu0 0.0
    %144 = vmatprep.subr.mxu0 %v112
    %145 = vmatpush1.msra.mxu0 %v110
    %146 = vmatprep.subr.mxu0 0.0
    %147 = vmatpush2.msra.mxu0 0.0
    %148 = vmatprep.subr.mxu0 0.0
    %149 = vmatpush2.msra.mxu0 0.0
    %150 = vmatprep.subr.mxu0 0.0
    %151 = vmatpush2.msra.mxu0 0.0
    %152 = vmatprep.subr.mxu0 0.0
    %153 = vmatpush2.msra.mxu0 0.0
    %154 = vmatprep.subr.mxu0 0.0
    %155 = vmatpush2.msra.mxu0 0.0
    %156 = vmatprep.subr.mxu0 0.0
    %157 = vmatpush2.msra.mxu0 0.0
    %158 = vmatprep.subr.mxu0 0.0
    %159 = vmatpush2.msra.mxu0 0.0
    %160 = vmatprep.subr.mxu0 0.0
    %161 = vmatpush2.msra.mxu0 0.0
    %162 = vmatprep.subr.mxu0 0.0
    %163 = vmatpush2.msra.mxu0 0.0
    %164 = vmatprep.subr.mxu0 0.0
    %165 = vmatpush2.msra.mxu0 0.0
    %166 = vmatprep.subr.mxu0 0.0
    %167 = vmatpush2.msra.mxu0 0.0
    %168 = vmatprep.subr.mxu0 0.0
    %169 = vmatpush2.msra.mxu0 0.0
    %170 = vmatprep.subr.mxu0 0.0
    %171 = vmatpush2.msra.mxu0 0.0
    %172 = vmatprep.subr.mxu0 0.0
    %173 = vmatpush2.msra.mxu0 0.0
    %174 = vmatprep.subr.mxu0 0.0
    %175 = vmatpush2.msra.mxu0 0.0
    %176 = vmatprep.subr.mxu0 0.0
    %177 = vmatpush2.msra.mxu0 0.0
    %178 = vmatprep.mubr.f32.mxu0 0.0
    %179 = vmatmul.mubr.f32.gmra.mxu0 %v104
    %v180 = vpop.f32.mrf.mxu0
    %v181 = vadd.f32 %v93, %v180
    %v182 = vpop.f32.mrf.mxu0
    %v183 = vadd.f32 %v97, %v182
    %184 = vmatprep.mubr.f32.mxu0 0.0
    %185 = vmatmul.mubr.f32.gmra.mxu0 %v107
    %v186 = vpop.f32.mrf.mxu0
    %v187 = vadd.f32 %v93, %v186
    %v188 = vpop.f32.mrf.mxu0
    %v189 = vadd.f32 %v97, %v188
    %190 = vdwg.mxu0
    %v191 = vld [vmem:[%s7] sm:$0xff]
    %v192 = vld [vmem:[%s8] sm:$0x3]
    %v194 = vlaneseq
    %v195 = vshrl.u32 %v194, 7
    %v196 = vsub.s32 0, %v195
    %v197 = vrot.slane %v192, %v196
    %v198 = vlaneseq
    %v199 = vshrl.u32 %v198, 7
    %v200 = vsub.s32 1, %v199
    %v201 = vrot.slane %v192, %v200
    %v204 = vrot.slane %v86, 6
    %v206 = vcombine.high %v191, %v191
    %v207 = vsel %vm102, %v204, 0
    %v209 = vsel %vm109, %v191, 0
    %v211 = vsel %vm109, %v206, 0
    %213 = vmatprep.subr.mxu0 0.0
    %214 = vmatpush1.msra.mxu0 0.0
    %215 = vmatprep.subr.mxu0 0.0
    %216 = vmatpush1.msra.mxu0 0.0
    %217 = vmatprep.subr.mxu0 0.0
    %218 = vmatpush1.msra.mxu0 0.0
    %219 = vmatprep.subr.mxu0 0.0
    %220 = vmatpush1.msra.mxu0 0.0
    %221 = vmatprep.subr.mxu0 0.0
    %222 = vmatpush1.msra.mxu0 0.0
    %223 = vmatprep.subr.mxu0 0.0
    %224 = vmatpush1.msra.mxu0 0.0
    %225 = vmatprep.subr.mxu0 0.0
    %226 = vmatpush1.msra.mxu0 0.0
    %227 = vmatprep.subr.mxu0 0.0
    %228 = vmatpush1.msra.mxu0 0.0
    %229 = vmatprep.subr.mxu0 0.0
    %230 = vmatpush1.msra.mxu0 0.0
    %231 = vmatprep.subr.mxu0 0.0
    %232 = vmatpush1.msra.mxu0 0.0
    %233 = vmatprep.subr.mxu0 0.0
    %234 = vmatpush1.msra.mxu0 0.0
    %235 = vmatprep.subr.mxu0 0.0
    %236 = vmatpush1.msra.mxu0 0.0
    %237 = vmatprep.subr.mxu0 0.0
    %238 = vmatpush1.msra.mxu0 0.0
    %239 = vmatprep.subr.mxu0 0.0
    %240 = vmatpush1.msra.mxu0 0.0
    %241 = vmatprep.subr.mxu0 0.0
    %242 = vmatpush1.msra.mxu0 0.0
    %243 = vmatprep.subr.mxu0 %v211
    %244 = vmatpush1.msra.mxu0 %v209
    %245 = vmatprep.subr.mxu0 0.0
    %246 = vmatpush2.msra.mxu0 0.0
    %247 = vmatprep.subr.mxu0 0.0
    %248 = vmatpush2.msra.mxu0 0.0
    %249 = vmatprep.subr.mxu0 0.0
    %250 = vmatpush2.msra.mxu0 0.0
    %251 = vmatprep.subr.mxu0 0.0
    %252 = vmatpush2.msra.mxu0 0.0
    %253 = vmatprep.subr.mxu0 0.0
    %254 = vmatpush2.msra.mxu0 0.0
    %255 = vmatprep.subr.mxu0 0.0
    %256 = vmatpush2.msra.mxu0 0.0
    %257 = vmatprep.subr.mxu0 0.0
    %258 = vmatpush2.msra.mxu0 0.0
    %259 = vmatprep.subr.mxu0 0.0
    %260 = vmatpush2.msra.mxu0 0.0
    %261 = vmatprep.subr.mxu0 0.0
    %262 = vmatpush2.msra.mxu0 0.0
    %263 = vmatprep.subr.mxu0 0.0
    %264 = vmatpush2.msra.mxu0 0.0
    %265 = vmatprep.subr.mxu0 0.0
    %266 = vmatpush2.msra.mxu0 0.0
    %267 = vmatprep.subr.mxu0 0.0
    %268 = vmatpush2.msra.mxu0 0.0
    %269 = vmatprep.subr.mxu0 0.0
    %270 = vmatpush2.msra.mxu0 0.0
    %271 = vmatprep.subr.mxu0 0.0
    %272 = vmatpush2.msra.mxu0 0.0
    %273 = vmatprep.subr.mxu0 0.0
    %274 = vmatpush2.msra.mxu0 0.0
    %275 = vmatprep.subr.mxu0 0.0
    %276 = vmatpush2.msra.mxu0 0.0
    %277 = vmatprep.mubr.f32.mxu0 0.0
    %278 = vmatmul.mubr.f32.gmra.mxu0 %v207
    %v279 = vpop.f32.mrf.mxu0
    %v280 = vadd.f32 %v197, %v279
    %v281 = vpop.f32.mrf.mxu0
    %v282 = vadd.f32 %v201, %v281
    %283 = vdwg.mxu0
    %v284 = vld [vmem:[#allocation2] sm:$0xff]
    %v285 = vld [vmem:[#allocation2 + $0x8] sm:$0xff]
    %v286 = vld [vmem:[#allocation2 + $0x10] sm:$0xff]
    %v287 = vld [vmem:[#allocation2 + $0x18] sm:$0xff]
    %v288 = vld [vmem:[#allocation2 + $0x20] sm:$0xff]
    %v289 = vld [vmem:[#allocation2 + $0x28] sm:$0xff]
    %v290 = vld [vmem:[#allocation2 + $0x30] sm:$0xff]
    %v291 = vld [vmem:[#allocation2 + $0x38] sm:$0xff]
    %v292 = vld [vmem:[#allocation2 + $0x40] sm:$0xff]
    %v293 = vld [vmem:[#allocation2 + $0x48] sm:$0xff]
    %v294 = vld [vmem:[#allocation2 + $0x50] sm:$0xff]
    %v295 = vld [vmem:[#allocation2 + $0x58] sm:$0xff]
    %v296 = vld [vmem:[#allocation2 + $0x60] sm:$0xff]
    %v297 = vld [vmem:[#allocation2 + $0x68] sm:$0xff]
    %v298 = vld [vmem:[#allocation2 + $0x70] sm:$0xff]
    %v299 = vld [vmem:[#allocation2 + $0x78] sm:$0xff]
    %vm300 = vcmask 523264
    %v302 = vsel %vm300, 0.0, 0
    %304 = vmatprep.subr.mxu0 0.0
    %305 = vmatpush1.msra.mxu0 0.0
    %306 = vmatprep.subr.mxu0 0.0
    %307 = vmatpush1.msra.mxu0 0.0
    %308 = vmatprep.subr.mxu0 0.0
    %309 = vmatpush1.msra.mxu0 0.0
    %310 = vmatprep.subr.mxu0 0.0
    %311 = vmatpush1.msra.mxu0 0.0
    %312 = vmatprep.subr.mxu0 0.0
    %313 = vmatpush1.msra.mxu0 0.0
    %314 = vmatprep.subr.mxu0 0.0
    %315 = vmatpush1.msra.mxu0 0.0
    %316 = vmatprep.subr.mxu0 0.0
    %317 = vmatpush1.msra.mxu0 0.0
    %318 = vmatprep.subr.mxu0 0.0
    %319 = vmatpush1.msra.mxu0 0.0
    %320 = vmatprep.subr.mxu0 %v299
    %321 = vmatpush1.msra.mxu0 %v298
    %322 = vmatprep.subr.mxu0 %v297
    %323 = vmatpush1.msra.mxu0 %v296
    %324 = vmatprep.subr.mxu0 %v295
    %325 = vmatpush1.msra.mxu0 %v294
    %326 = vmatprep.subr.mxu0 %v293
    %327 = vmatpush1.msra.mxu0 %v292
    %328 = vmatprep.subr.mxu0 %v291
    %329 = vmatpush1.msra.mxu0 %v290
    %330 = vmatprep.subr.mxu0 %v289
    %331 = vmatpush1.msra.mxu0 %v288
    %332 = vmatprep.subr.mxu0 %v287
    %333 = vmatpush1.msra.mxu0 %v286
    %334 = vmatprep.subr.mxu0 %v285
    %335 = vmatpush1.msra.mxu0 %v284
    %336 = vmatprep.subr.mxu0 0.0
    %337 = vmatpush2.msra.mxu0 0.0
    %338 = vmatprep.subr.mxu0 0.0
    %339 = vmatpush2.msra.mxu0 0.0
    %340 = vmatprep.subr.mxu0 0.0
    %341 = vmatpush2.msra.mxu0 0.0
    %342 = vmatprep.subr.mxu0 0.0
    %343 = vmatpush2.msra.mxu0 0.0
    %344 = vmatprep.subr.mxu0 0.0
    %345 = vmatpush2.msra.mxu0 0.0
    %346 = vmatprep.subr.mxu0 0.0
    %347 = vmatpush2.msra.mxu0 0.0
    %348 = vmatprep.subr.mxu0 0.0
    %349 = vmatpush2.msra.mxu0 0.0
    %350 = vmatprep.subr.mxu0 0.0
    %351 = vmatpush2.msra.mxu0 0.0
    %352 = vmatprep.subr.mxu0 0.0
    %353 = vmatpush2.msra.mxu0 0.0
    %354 = vmatprep.subr.mxu0 0.0
    %355 = vmatpush2.msra.mxu0 0.0
    %356 = vmatprep.subr.mxu0 0.0
    %357 = vmatpush2.msra.mxu0 0.0
    %358 = vmatprep.subr.mxu0 0.0
    %359 = vmatpush2.msra.mxu0 0.0
    %360 = vmatprep.subr.mxu0 0.0
    %361 = vmatpush2.msra.mxu0 0.0
    %362 = vmatprep.subr.mxu0 0.0
    %363 = vmatpush2.msra.mxu0 0.0
    %364 = vmatprep.subr.mxu0 0.0
    %365 = vmatpush2.msra.mxu0 0.0
    %366 = vmatprep.subr.mxu0 0.0
    %367 = vmatpush2.msra.mxu0 0.0
    %368 = vmatprep.mubr.f32.mxu0 0.0
    %369 = vmatmul.mubr.f32.gmra.mxu0 %v302
    %v370 = vpop.f32.mrf.mxu0
    %v371 = vadd.f32 0.0, %v370
    %v372 = vpop.f32.mrf.mxu0
    %v373 = vadd.f32 0.0, %v372
    %374 = vdwg.mxu0
    %v375 = vadd.f32 %v181, %v371
    %v376 = vadd.f32 %v183, %v373
    %v377 = vxor.u32 %v375, 2147483648
    %v378 = vxor.u32 %v376, 2147483648
    %v379 = vmul.f32 %v377, 1.442695
    %v380 = vpow.pop %v379
    %v381 = vmul.f32 %v378, 1.442695
    %v382 = vpow.pop %v381
    %v383 = vadd.f32 %v380, 1.0
    %v384 = vadd.f32 %v382, 1.0
    %v385 = vrcp.pop %v383
    %v386 = vmul.f32 1.0, %v385
    %v387 = vrcp.pop %v384
    %v388 = vmul.f32 1.0, %v387
    %v389 = vmul.f32 %v388, 2.0
    %v390 = vsub.f32 %v389, 1.0
    %v391 = vmul.f32 %v386, 0.0
    %v392 = vmul.f32 %v386, %v390
    %394 = vrot.lane.b32.xlu0 %v392, 64
    %v395 = vpop.permute.xlu0 %394
    %v397 = vadd.f32 %v391, %v395
    %v398 = vtanh.pop %v397
    %v399 = vmul.f32 %v388, %v398
    %401 = vrot.lane.b32.xlu0 %v399, 64
    %v402 = vpop.permute.xlu0 %401
    %v403 = vsel %vm300, %v402, 0
    %405 = vmatprep.subr.mxu0 0.0
    %406 = vmatpush1.msra.mxu0 0.0
    %407 = vmatprep.subr.mxu0 0.0
    %408 = vmatpush1.msra.mxu0 0.0
    %409 = vmatprep.subr.mxu0 0.0
    %410 = vmatpush1.msra.mxu0 0.0
    %411 = vmatprep.subr.mxu0 0.0
    %412 = vmatpush1.msra.mxu0 0.0
    %413 = vmatprep.subr.mxu0 0.0
    %414 = vmatpush1.msra.mxu0 0.0
    %415 = vmatprep.subr.mxu0 0.0
    %416 = vmatpush1.msra.mxu0 0.0
    %417 = vmatprep.subr.mxu0 0.0
    %418 = vmatpush1.msra.mxu0 0.0
    %419 = vmatprep.subr.mxu0 0.0
    %420 = vmatpush1.msra.mxu0 0.0
    %421 = vmatprep.subr.mxu0 %v299
    %422 = vmatpush1.msra.mxu0 %v298
    %423 = vmatprep.subr.mxu0 %v297
    %424 = vmatpush1.msra.mxu0 %v296
    %425 = vmatprep.subr.mxu0 %v295
    %426 = vmatpush1.msra.mxu0 %v294
    %427 = vmatprep.subr.mxu0 %v293
    %428 = vmatpush1.msra.mxu0 %v292
    %429 = vmatprep.subr.mxu0 %v291
    %430 = vmatpush1.msra.mxu0 %v290
    %431 = vmatprep.subr.mxu0 %v289
    %432 = vmatpush1.msra.mxu0 %v288
    %433 = vmatprep.subr.mxu0 %v287
    %434 = vmatpush1.msra.mxu0 %v286
    %435 = vmatprep.subr.mxu0 %v285
    %436 = vmatpush1.msra.mxu0 %v284
    %437 = vmatprep.subr.mxu0 0.0
    %438 = vmatpush2.msra.mxu0 0.0
    %439 = vmatprep.subr.mxu0 0.0
    %440 = vmatpush2.msra.mxu0 0.0
    %441 = vmatprep.subr.mxu0 0.0
    %442 = vmatpush2.msra.mxu0 0.0
    %443 = vmatprep.subr.mxu0 0.0
    %444 = vmatpush2.msra.mxu0 0.0
    %445 = vmatprep.subr.mxu0 0.0
    %446 = vmatpush2.msra.mxu0 0.0
    %447 = vmatprep.subr.mxu0 0.0
    %448 = vmatpush2.msra.mxu0 0.0
    %449 = vmatprep.subr.mxu0 0.0
    %450 = vmatpush2.msra.mxu0 0.0
    %451 = vmatprep.subr.mxu0 0.0
    %452 = vmatpush2.msra.mxu0 0.0
    %453 = vmatprep.subr.mxu0 0.0
    %454 = vmatpush2.msra.mxu0 0.0
    %455 = vmatprep.subr.mxu0 0.0
    %456 = vmatpush2.msra.mxu0 0.0
    %457 = vmatprep.subr.mxu0 0.0
    %458 = vmatpush2.msra.mxu0 0.0
    %459 = vmatprep.subr.mxu0 0.0
    %460 = vmatpush2.msra.mxu0 0.0
    %461 = vmatprep.subr.mxu0 0.0
    %462 = vmatpush2.msra.mxu0 0.0
    %463 = vmatprep.subr.mxu0 0.0
    %464 = vmatpush2.msra.mxu0 0.0
    %465 = vmatprep.subr.mxu0 0.0
    %466 = vmatpush2.msra.mxu0 0.0
    %467 = vmatprep.subr.mxu0 0.0
    %468 = vmatpush2.msra.mxu0 0.0
    %469 = vmatprep.mubr.f32.mxu0 0.0
    %470 = vmatmul.mubr.f32.gmra.mxu0 %v403
    %v471 = vpop.f32.mrf.mxu0
    %v472 = vadd.f32 0.0, %v471
    %v473 = vpop.f32.mrf.mxu0
    %v474 = vadd.f32 0.0, %v473
    %475 = vdwg.mxu0
    %v478 = vrot.slane %v472, 6
    %v479 = vrot.slane %v474, 6
    %v482 = vadd.f32 %v181, %v478
    %v483 = vadd.f32 %v183, %v479
    %v484 = vxor.u32 %v482, 2147483648
    %v485 = vxor.u32 %v483, 2147483648
    %v486 = vmul.f32 %v484, 1.442695
    %v487 = vpow.pop %v486
    %v488 = vmul.f32 %v485, 1.442695
    %v489 = vpow.pop %v488
    %v490 = vadd.f32 %v487, 1.0
    %v491 = vadd.f32 %v489, 1.0
    %v492 = vrcp.pop %v490
    %v493 = vmul.f32 1.0, %v492
    %v494 = vrcp.pop %v491
    %v495 = vmul.f32 1.0, %v494
    %v496 = vmul.f32 %v495, 2.0
    %v497 = vsub.f32 %v496, 1.0
    %v499 = vrot.slane %v397, 6
    %v501 = vmul.f32 %v493, %v499
    %v502 = vmul.f32 %v493, %v497
    %504 = vrot.lane.b32.xlu0 %v502, 64
    %v505 = vpop.permute.xlu0 %504
    %v507 = vadd.f32 %v501, %v505
    %v508 = vtanh.pop %v507
    %v509 = vmul.f32 %v495, %v508
    %v511 = vrot.slane %v509, 2
    %512 = vrot.lane.b32.xlu0 %v511, 64
    %v513 = vpop.permute.xlu0 %512
    %v514 = vsel %vm300, %v513, 0
    %516 = vmatprep.subr.mxu0 0.0
    %517 = vmatpush1.msra.mxu0 0.0
    %518 = vmatprep.subr.mxu0 0.0
    %519 = vmatpush1.msra.mxu0 0.0
    %520 = vmatprep.subr.mxu0 0.0
    %521 = vmatpush1.msra.mxu0 0.0
    %522 = vmatprep.subr.mxu0 0.0
    %523 = vmatpush1.msra.mxu0 0.0
    %524 = vmatprep.subr.mxu0 0.0
    %525 = vmatpush1.msra.mxu0 0.0
    %526 = vmatprep.subr.mxu0 0.0
    %527 = vmatpush1.msra.mxu0 0.0
    %528 = vmatprep.subr.mxu0 0.0
    %529 = vmatpush1.msra.mxu0 0.0
    %530 = vmatprep.subr.mxu0 0.0
    %531 = vmatpush1.msra.mxu0 0.0
    %532 = vmatprep.subr.mxu0 %v299
    %533 = vmatpush1.msra.mxu0 %v298
    %534 = vmatprep.subr.mxu0 %v297
    %535 = vmatpush1.msra.mxu0 %v296
    %536 = vmatprep.subr.mxu0 %v295
    %537 = vmatpush1.msra.mxu0 %v294
    %538 = vmatprep.subr.mxu0 %v293
    %539 = vmatpush1.msra.mxu0 %v292
    %540 = vmatprep.subr.mxu0 %v291
    %541 = vmatpush1.msra.mxu0 %v290
    %542 = vmatprep.subr.mxu0 %v289
    %543 = vmatpush1.msra.mxu0 %v288
    %544 = vmatprep.subr.mxu0 %v287
    %545 = vmatpush1.msra.mxu0 %v286
    %546 = vmatprep.subr.mxu0 %v285
    %547 = vmatpush1.msra.mxu0 %v284
    %548 = vmatprep.subr.mxu0 0.0
    %549 = vmatpush2.msra.mxu0 0.0
    %550 = vmatprep.subr.mxu0 0.0
    %551 = vmatpush2.msra.mxu0 0.0
    %552 = vmatprep.subr.mxu0 0.0
    %553 = vmatpush2.msra.mxu0 0.0
    %554 = vmatprep.subr.mxu0 0.0
    %555 = vmatpush2.msra.mxu0 0.0
    %556 = vmatprep.subr.mxu0 0.0
    %557 = vmatpush2.msra.mxu0 0.0
    %558 = vmatprep.subr.mxu0 0.0
    %559 = vmatpush2.msra.mxu0 0.0
    %560 = vmatprep.subr.mxu0 0.0
    %561 = vmatpush2.msra.mxu0 0.0
    %562 = vmatprep.subr.mxu0 0.0
    %563 = vmatpush2.msra.mxu0 0.0
    %564 = vmatprep.subr.mxu0 0.0
    %565 = vmatpush2.msra.mxu0 0.0
    %566 = vmatprep.subr.mxu0 0.0
    %567 = vmatpush2.msra.mxu0 0.0
    %568 = vmatprep.subr.mxu0 0.0
    %569 = vmatpush2.msra.mxu0 0.0
    %570 = vmatprep.subr.mxu0 0.0
    %571 = vmatpush2.msra.mxu0 0.0
    %572 = vmatprep.subr.mxu0 0.0
    %573 = vmatpush2.msra.mxu0 0.0
    %574 = vmatprep.subr.mxu0 0.0
    %575 = vmatpush2.msra.mxu0 0.0
    %576 = vmatprep.subr.mxu0 0.0
    %577 = vmatpush2.msra.mxu0 0.0
    %578 = vmatprep.subr.mxu0 0.0
    %579 = vmatpush2.msra.mxu0 0.0
    %580 = vmatprep.mubr.f32.mxu0 0.0
    %581 = vmatmul.mubr.f32.gmra.mxu0 %v514
    %v582 = vpop.f32.mrf.mxu0
    %v583 = vadd.f32 0.0, %v582
    %v584 = vpop.f32.mrf.mxu0
    %v585 = vadd.f32 0.0, %v584
    %586 = vdwg.mxu0
    %v589 = vrot.slane %v583, 4
    %v590 = vrot.slane %v585, 4
    %v593 = vadd.f32 %v181, %v589
    %v594 = vadd.f32 %v183, %v590
    %v595 = vxor.u32 %v593, 2147483648
    %v596 = vxor.u32 %v594, 2147483648
    %v597 = vmul.f32 %v595, 1.442695
    %v598 = vpow.pop %v597
    %v599 = vmul.f32 %v596, 1.442695
    %v600 = vpow.pop %v599
    %v601 = vadd.f32 %v598, 1.0
    %v602 = vadd.f32 %v600, 1.0
    %v603 = vrcp.pop %v601
    %v604 = vmul.f32 1.0, %v603
    %v605 = vrcp.pop %v602
    %v606 = vmul.f32 1.0, %v605
    %v607 = vmul.f32 %v606, 2.0
    %v608 = vsub.f32 %v607, 1.0
    %v610 = vrot.slane %v507, 6
    %v612 = vmul.f32 %v604, %v610
    %v613 = vmul.f32 %v604, %v608
    %615 = vrot.lane.b32.xlu0 %v613, 64
    %v616 = vpop.permute.xlu0 %615
    %v618 = vadd.f32 %v612, %v616
    %v619 = vtanh.pop %v618
    %v620 = vmul.f32 %v606, %v619
    %v622 = vrot.slane %v620, 4
    %623 = vrot.lane.b32.xlu0 %v622, 64
    %v624 = vpop.permute.xlu0 %623
    %v625 = vsel %vm300, %v624, 0
    %627 = vmatprep.subr.mxu0 0.0
    %628 = vmatpush1.msra.mxu0 0.0
    %629 = vmatprep.subr.mxu0 0.0
    %630 = vmatpush1.msra.mxu0 0.0
    %631 = vmatprep.subr.mxu0 0.0
    %632 = vmatpush1.msra.mxu0 0.0
    %633 = vmatprep.subr.mxu0 0.0
    %634 = vmatpush1.msra.mxu0 0.0
    %635 = vmatprep.subr.mxu0 0.0
    %636 = vmatpush1.msra.mxu0 0.0
    %637 = vmatprep.subr.mxu0 0.0
    %638 = vmatpush1.msra.mxu0 0.0
    %639 = vmatprep.subr.mxu0 0.0
    %640 = vmatpush1.msra.mxu0 0.0
    %641 = vmatprep.subr.mxu0 0.0
    %642 = vmatpush1.msra.mxu0 0.0
    %643 = vmatprep.subr.mxu0 %v299
    %644 = vmatpush1.msra.mxu0 %v298
    %645 = vmatprep.subr.mxu0 %v297
    %646 = vmatpush1.msra.mxu0 %v296
    %647 = vmatprep.subr.mxu0 %v295
    %648 = vmatpush1.msra.mxu0 %v294
    %649 = vmatprep.subr.mxu0 %v293
    %650 = vmatpush1.msra.mxu0 %v292
    %651 = vmatprep.subr.mxu0 %v291
    %652 = vmatpush1.msra.mxu0 %v290
    %653 = vmatprep.subr.mxu0 %v289
    %654 = vmatpush1.msra.mxu0 %v288
    %655 = vmatprep.subr.mxu0 %v287
    %656 = vmatpush1.msra.mxu0 %v286
    %657 = vmatprep.subr.mxu0 %v285
    %658 = vmatpush1.msra.mxu0 %v284
    %659 = vmatprep.subr.mxu0 0.0
    %660 = vmatpush2.msra.mxu0 0.0
    %661 = vmatprep.subr.mxu0 0.0
    %662 = vmatpush2.msra.mxu0 0.0
    %663 = vmatprep.subr.mxu0 0.0
    %664 = vmatpush2.msra.mxu0 0.0
    %665 = vmatprep.subr.mxu0 0.0
    %666 = vmatpush2.msra.mxu0 0.0
    %667 = vmatprep.subr.mxu0 0.0
    %668 = vmatpush2.msra.mxu0 0.0
    %669 = vmatprep.subr.mxu0 0.0
    %670 = vmatpush2.msra.mxu0 0.0
    %671 = vmatprep.subr.mxu0 0.0
    %672 = vmatpush2.msra.mxu0 0.0
    %673 = vmatprep.subr.mxu0 0.0
    %674 = vmatpush2.msra.mxu0 0.0
    %675 = vmatprep.subr.mxu0 0.0
    %676 = vmatpush2.msra.mxu0 0.0
    %677 = vmatprep.subr.mxu0 0.0
    %678 = vmatpush2.msra.mxu0 0.0
    %679 = vmatprep.subr.mxu0 0.0
    %680 = vmatpush2.msra.mxu0 0.0
    %681 = vmatprep.subr.mxu0 0.0
    %682 = vmatpush2.msra.mxu0 0.0
    %683 = vmatprep.subr.mxu0 0.0
    %684 = vmatpush2.msra.mxu0 0.0
    %685 = vmatprep.subr.mxu0 0.0
    %686 = vmatpush2.msra.mxu0 0.0
    %687 = vmatprep.subr.mxu0 0.0
    %688 = vmatpush2.msra.mxu0 0.0
    %689 = vmatprep.subr.mxu0 0.0
    %690 = vmatpush2.msra.mxu0 0.0
    %691 = vmatprep.mubr.f32.mxu0 0.0
    %692 = vmatmul.mubr.f32.gmra.mxu0 %v625
    %v693 = vpop.f32.mrf.mxu0
    %v694 = vadd.f32 0.0, %v693
    %v695 = vpop.f32.mrf.mxu0
    %v696 = vadd.f32 0.0, %v695
    %697 = vdwg.mxu0
    %v700 = vrot.slane %v694, 2
    %v701 = vrot.slane %v696, 2
    %v704 = vadd.f32 %v181, %v700
    %v705 = vadd.f32 %v183, %v701
    %v706 = vxor.u32 %v704, 2147483648
    %v707 = vxor.u32 %v705, 2147483648
    %v708 = vmul.f32 %v706, 1.442695
    %v709 = vpow.pop %v708
    %v710 = vmul.f32 %v707, 1.442695
    %v711 = vpow.pop %v710
    %v712 = vadd.f32 %v709, 1.0
    %v713 = vadd.f32 %v711, 1.0
    %v714 = vrcp.pop %v712
    %v715 = vmul.f32 1.0, %v714
    %v716 = vrcp.pop %v713
    %v717 = vmul.f32 1.0, %v716
    %v718 = vmul.f32 %v717, 2.0
    %v719 = vsub.f32 %v718, 1.0
    %v721 = vrot.slane %v618, 6
    %v723 = vmul.f32 %v715, %v721
    %v724 = vmul.f32 %v715, %v719
    %726 = vrot.lane.b32.xlu0 %v724, 64
    %v727 = vpop.permute.xlu0 %726
    %v729 = vadd.f32 %v723, %v727
    %v730 = vtanh.pop %v729
    %v731 = vmul.f32 %v717, %v730
    %v733 = vrot.slane %v731, 6
    %734 = vrot.lane.b32.xlu0 %v733, 64
    %v735 = vpop.permute.xlu0 %734
    %v736 = vsel %vm300, %v735, 0
    %738 = vmatprep.subr.mxu0 0.0
    %739 = vmatpush1.msra.mxu0 0.0
    %740 = vmatprep.subr.mxu0 0.0
    %741 = vmatpush1.msra.mxu0 0.0
    %742 = vmatprep.subr.mxu0 0.0
    %743 = vmatpush1.msra.mxu0 0.0
    %744 = vmatprep.subr.mxu0 0.0
    %745 = vmatpush1.msra.mxu0 0.0
    %746 = vmatprep.subr.mxu0 0.0
    %747 = vmatpush1.msra.mxu0 0.0
    %748 = vmatprep.subr.mxu0 0.0
    %749 = vmatpush1.msra.mxu0 0.0
    %750 = vmatprep.subr.mxu0 0.0
    %751 = vmatpush1.msra.mxu0 0.0
    %752 = vmatprep.subr.mxu0 0.0
    %753 = vmatpush1.msra.mxu0 0.0
    %754 = vmatprep.subr.mxu0 %v299
    %755 = vmatpush1.msra.mxu0 %v298
    %756 = vmatprep.subr.mxu0 %v297
    %757 = vmatpush1.msra.mxu0 %v296
    %758 = vmatprep.subr.mxu0 %v295
    %759 = vmatpush1.msra.mxu0 %v294
    %760 = vmatprep.subr.mxu0 %v293
    %761 = vmatpush1.msra.mxu0 %v292
    %762 = vmatprep.subr.mxu0 %v291
    %763 = vmatpush1.msra.mxu0 %v290
    %764 = vmatprep.subr.mxu0 %v289
    %765 = vmatpush1.msra.mxu0 %v288
    %766 = vmatprep.subr.mxu0 %v287
    %767 = vmatpush1.msra.mxu0 %v286
    %768 = vmatprep.subr.mxu0 %v285
    %769 = vmatpush1.msra.mxu0 %v284
    %770 = vmatprep.subr.mxu0 0.0
    %771 = vmatpush2.msra.mxu0 0.0
    %772 = vmatprep.subr.mxu0 0.0
    %773 = vmatpush2.msra.mxu0 0.0
    %774 = vmatprep.subr.mxu0 0.0
    %775 = vmatpush2.msra.mxu0 0.0
    %776 = vmatprep.subr.mxu0 0.0
    %777 = vmatpush2.msra.mxu0 0.0
    %778 = vmatprep.subr.mxu0 0.0
    %779 = vmatpush2.msra.mxu0 0.0
    %780 = vmatprep.subr.mxu0 0.0
    %781 = vmatpush2.msra.mxu0 0.0
    %782 = vmatprep.subr.mxu0 0.0
    %783 = vmatpush2.msra.mxu0 0.0
    %784 = vmatprep.subr.mxu0 0.0
    %785 = vmatpush2.msra.mxu0 0.0
    %786 = vmatprep.subr.mxu0 0.0
    %787 = vmatpush2.msra.mxu0 0.0
    %788 = vmatprep.subr.mxu0 0.0
    %789 = vmatpush2.msra.mxu0 0.0
    %790 = vmatprep.subr.mxu0 0.0
    %791 = vmatpush2.msra.mxu0 0.0
    %792 = vmatprep.subr.mxu0 0.0
    %793 = vmatpush2.msra.mxu0 0.0
    %794 = vmatprep.subr.mxu0 0.0
    %795 = vmatpush2.msra.mxu0 0.0
    %796 = vmatprep.subr.mxu0 0.0
    %797 = vmatpush2.msra.mxu0 0.0
    %798 = vmatprep.subr.mxu0 0.0
    %799 = vmatpush2.msra.mxu0 0.0
    %800 = vmatprep.subr.mxu0 0.0
    %801 = vmatpush2.msra.mxu0 0.0
    %802 = vmatprep.mubr.f32.mxu0 0.0
    %803 = vmatmul.mubr.f32.gmra.mxu0 %v736
    %v804 = vpop.f32.mrf.mxu0
    %v805 = vadd.f32 0.0, %v804
    %v806 = vpop.f32.mrf.mxu0
    %v807 = vadd.f32 0.0, %v806
    %808 = vdwg.mxu0
    %v809 = vadd.f32 %v187, %v805
    %v810 = vadd.f32 %v189, %v807
    %v811 = vxor.u32 %v809, 2147483648
    %v812 = vxor.u32 %v810, 2147483648
    %v813 = vmul.f32 %v811, 1.442695
    %v814 = vpow.pop %v813
    %v815 = vmul.f32 %v812, 1.442695
    %v816 = vpow.pop %v815
    %v817 = vadd.f32 %v814, 1.0
    %v818 = vadd.f32 %v816, 1.0
    %v819 = vrcp.pop %v817
    %v820 = vmul.f32 1.0, %v819
    %v821 = vrcp.pop %v818
    %v822 = vmul.f32 1.0, %v821
    %v823 = vmul.f32 %v822, 2.0
    %v824 = vsub.f32 %v823, 1.0
    %v826 = vrot.slane %v729, 6
    %v828 = vmul.f32 %v820, %v826
    %v829 = vmul.f32 %v820, %v824
    %831 = vrot.lane.b32.xlu0 %v829, 64
    %v832 = vpop.permute.xlu0 %831
    %v834 = vadd.f32 %v828, %v832
    %v835 = vtanh.pop %v834
    %v836 = vmul.f32 %v822, %v835
    %838 = vrot.lane.b32.xlu0 %v836, 64
    %v839 = vpop.permute.xlu0 %838
    %v840 = vsel %vm300, %v839, 0
    %842 = vmatprep.subr.mxu0 0.0
    %843 = vmatpush1.msra.mxu0 0.0
    %844 = vmatprep.subr.mxu0 0.0
    %845 = vmatpush1.msra.mxu0 0.0
    %846 = vmatprep.subr.mxu0 0.0
    %847 = vmatpush1.msra.mxu0 0.0
    %848 = vmatprep.subr.mxu0 0.0
    %849 = vmatpush1.msra.mxu0 0.0
    %850 = vmatprep.subr.mxu0 0.0
    %851 = vmatpush1.msra.mxu0 0.0
    %852 = vmatprep.subr.mxu0 0.0
    %853 = vmatpush1.msra.mxu0 0.0
    %854 = vmatprep.subr.mxu0 0.0
    %855 = vmatpush1.msra.mxu0 0.0
    %856 = vmatprep.subr.mxu0 0.0
    %857 = vmatpush1.msra.mxu0 0.0
    %858 = vmatprep.subr.mxu0 %v299
    %859 = vmatpush1.msra.mxu0 %v298
    %860 = vmatprep.subr.mxu0 %v297
    %861 = vmatpush1.msra.mxu0 %v296
    %862 = vmatprep.subr.mxu0 %v295
    %863 = vmatpush1.msra.mxu0 %v294
    %864 = vmatprep.subr.mxu0 %v293
    %865 = vmatpush1.msra.mxu0 %v292
    %866 = vmatprep.subr.mxu0 %v291
    %867 = vmatpush1.msra.mxu0 %v290
    %868 = vmatprep.subr.mxu0 %v289
    %869 = vmatpush1.msra.mxu0 %v288
    %870 = vmatprep.subr.mxu0 %v287
    %871 = vmatpush1.msra.mxu0 %v286
    %872 = vmatprep.subr.mxu0 %v285
    %873 = vmatpush1.msra.mxu0 %v284
    %874 = vmatprep.subr.mxu0 0.0
    %875 = vmatpush2.msra.mxu0 0.0
    %876 = vmatprep.subr.mxu0 0.0
    %877 = vmatpush2.msra.mxu0 0.0
    %878 = vmatprep.subr.mxu0 0.0
    %879 = vmatpush2.msra.mxu0 0.0
    %880 = vmatprep.subr.mxu0 0.0
    %881 = vmatpush2.msra.mxu0 0.0
    %882 = vmatprep.subr.mxu0 0.0
    %883 = vmatpush2.msra.mxu0 0.0
    %884 = vmatprep.subr.mxu0 0.0
    %885 = vmatpush2.msra.mxu0 0.0
    %886 = vmatprep.subr.mxu0 0.0
    %887 = vmatpush2.msra.mxu0 0.0
    %888 = vmatprep.subr.mxu0 0.0
    %889 = vmatpush2.msra.mxu0 0.0
    %890 = vmatprep.subr.mxu0 0.0
    %891 = vmatpush2.msra.mxu0 0.0
    %892 = vmatprep.subr.mxu0 0.0
    %893 = vmatpush2.msra.mxu0 0.0
    %894 = vmatprep.subr.mxu0 0.0
    %895 = vmatpush2.msra.mxu0 0.0
    %896 = vmatprep.subr.mxu0 0.0
    %897 = vmatpush2.msra.mxu0 0.0
    %898 = vmatprep.subr.mxu0 0.0
    %899 = vmatpush2.msra.mxu0 0.0
    %900 = vmatprep.subr.mxu0 0.0
    %901 = vmatpush2.msra.mxu0 0.0
    %902 = vmatprep.subr.mxu0 0.0
    %903 = vmatpush2.msra.mxu0 0.0
    %904 = vmatprep.subr.mxu0 0.0
    %905 = vmatpush2.msra.mxu0 0.0
    %906 = vmatprep.mubr.f32.mxu0 0.0
    %907 = vmatmul.mubr.f32.gmra.mxu0 %v840
    %v908 = vpop.f32.mrf.mxu0
    %v909 = vadd.f32 0.0, %v908
    %v910 = vpop.f32.mrf.mxu0
    %v911 = vadd.f32 0.0, %v910
    %912 = vdwg.mxu0
    %v915 = vrot.slane %v909, 6
    %v916 = vrot.slane %v911, 6
    %v919 = vadd.f32 %v187, %v915
    %v920 = vadd.f32 %v189, %v916
    %v921 = vxor.u32 %v919, 2147483648
    %v922 = vxor.u32 %v920, 2147483648
    %v923 = vmul.f32 %v921, 1.442695
    %v924 = vpow.pop %v923
    %v925 = vmul.f32 %v922, 1.442695
    %v926 = vpow.pop %v925
    %v927 = vadd.f32 %v924, 1.0
    %v928 = vadd.f32 %v926, 1.0
    %v929 = vrcp.pop %v927
    %v930 = vmul.f32 1.0, %v929
    %v931 = vrcp.pop %v928
    %v932 = vmul.f32 1.0, %v931
    %v933 = vmul.f32 %v932, 2.0
    %v934 = vsub.f32 %v933, 1.0
    %v936 = vrot.slane %v834, 6
    %v938 = vmul.f32 %v930, %v936
    %v939 = vmul.f32 %v930, %v934
    %941 = vrot.lane.b32.xlu0 %v939, 64
    %v942 = vpop.permute.xlu0 %941
    %v944 = vadd.f32 %v938, %v942
    %v945 = vtanh.pop %v944
    %v946 = vmul.f32 %v932, %v945
    %v948 = vrot.slane %v946, 2
    %949 = vrot.lane.b32.xlu0 %v948, 64
    %v950 = vpop.permute.xlu0 %949
    %v951 = vsel %vm300, %v950, 0
    %953 = vmatprep.subr.mxu0 0.0
    %954 = vmatpush1.msra.mxu0 0.0
    %955 = vmatprep.subr.mxu0 0.0
    %956 = vmatpush1.msra.mxu0 0.0
    %957 = vmatprep.subr.mxu0 0.0
    %958 = vmatpush1.msra.mxu0 0.0
    %959 = vmatprep.subr.mxu0 0.0
    %960 = vmatpush1.msra.mxu0 0.0
    %961 = vmatprep.subr.mxu0 0.0
    %962 = vmatpush1.msra.mxu0 0.0
    %963 = vmatprep.subr.mxu0 0.0
    %964 = vmatpush1.msra.mxu0 0.0
    %965 = vmatprep.subr.mxu0 0.0
    %966 = vmatpush1.msra.mxu0 0.0
    %967 = vmatprep.subr.mxu0 0.0
    %968 = vmatpush1.msra.mxu0 0.0
    %969 = vmatprep.subr.mxu0 %v299
    %970 = vmatpush1.msra.mxu0 %v298
    %971 = vmatprep.subr.mxu0 %v297
    %972 = vmatpush1.msra.mxu0 %v296
    %973 = vmatprep.subr.mxu0 %v295
    %974 = vmatpush1.msra.mxu0 %v294
    %975 = vmatprep.subr.mxu0 %v293
    %976 = vmatpush1.msra.mxu0 %v292
    %977 = vmatprep.subr.mxu0 %v291
    %978 = vmatpush1.msra.mxu0 %v290
    %979 = vmatprep.subr.mxu0 %v289
    %980 = vmatpush1.msra.mxu0 %v288
    %981 = vmatprep.subr.mxu0 %v287
    %982 = vmatpush1.msra.mxu0 %v286
    %983 = vmatprep.subr.mxu0 %v285
    %984 = vmatpush1.msra.mxu0 %v284
    %985 = vmatprep.subr.mxu0 0.0
    %986 = vmatpush2.msra.mxu0 0.0
    %987 = vmatprep.subr.mxu0 0.0
    %988 = vmatpush2.msra.mxu0 0.0
    %989 = vmatprep.subr.mxu0 0.0
    %990 = vmatpush2.msra.mxu0 0.0
    %991 = vmatprep.subr.mxu0 0.0
    %992 = vmatpush2.msra.mxu0 0.0
    %993 = vmatprep.subr.mxu0 0.0
    %994 = vmatpush2.msra.mxu0 0.0
    %995 = vmatprep.subr.mxu0 0.0
    %996 = vmatpush2.msra.mxu0 0.0
    %997 = vmatprep.subr.mxu0 0.0
    %998 = vmatpush2.msra.mxu0 0.0
    %999 = vmatprep.subr.mxu0 0.0
    %1000 = vmatpush2.msra.mxu0 0.0
    %1001 = vmatprep.subr.mxu0 0.0
    %1002 = vmatpush2.msra.mxu0 0.0
    %1003 = vmatprep.subr.mxu0 0.0
    %1004 = vmatpush2.msra.mxu0 0.0
    %1005 = vmatprep.subr.mxu0 0.0
    %1006 = vmatpush2.msra.mxu0 0.0
    %1007 = vmatprep.subr.mxu0 0.0
    %1008 = vmatpush2.msra.mxu0 0.0
    %1009 = vmatprep.subr.mxu0 0.0
    %1010 = vmatpush2.msra.mxu0 0.0
    %1011 = vmatprep.subr.mxu0 0.0
    %1012 = vmatpush2.msra.mxu0 0.0
    %1013 = vmatprep.subr.mxu0 0.0
    %1014 = vmatpush2.msra.mxu0 0.0
    %1015 = vmatprep.subr.mxu0 0.0
    %1016 = vmatpush2.msra.mxu0 0.0
    %1017 = vmatprep.mubr.f32.mxu0 0.0
    %1018 = vmatmul.mubr.f32.gmra.mxu0 %v951
    %v1019 = vpop.f32.mrf.mxu0
    %v1020 = vadd.f32 0.0, %v1019
    %v1021 = vpop.f32.mrf.mxu0
    %v1022 = vadd.f32 0.0, %v1021
    %1023 = vdwg.mxu0
    %v1026 = vrot.slane %v1020, 4
    %v1027 = vrot.slane %v1022, 4
    %v1030 = vadd.f32 %v187, %v1026
    %v1031 = vadd.f32 %v189, %v1027
    %v1032 = vxor.u32 %v1030, 2147483648
    %v1033 = vxor.u32 %v1031, 2147483648
    %v1034 = vmul.f32 %v1032, 1.442695
    %v1035 = vpow.pop %v1034
    %v1036 = vmul.f32 %v1033, 1.442695
    %v1037 = vpow.pop %v1036
    %v1038 = vadd.f32 %v1035, 1.0
    %v1039 = vadd.f32 %v1037, 1.0
    %v1040 = vrcp.pop %v1038
    %v1041 = vmul.f32 1.0, %v1040
    %v1042 = vrcp.pop %v1039
    %v1043 = vmul.f32 1.0, %v1042
    %v1044 = vmul.f32 %v1043, 2.0
    %v1045 = vsub.f32 %v1044, 1.0
    %v1047 = vrot.slane %v944, 6
    %v1049 = vmul.f32 %v1041, %v1047
    %v1050 = vmul.f32 %v1041, %v1045
    %1052 = vrot.lane.b32.xlu0 %v1050, 64
    %v1053 = vpop.permute.xlu0 %1052
    %v1055 = vadd.f32 %v1049, %v1053
    %v1056 = vtanh.pop %v1055
    %v1057 = vmul.f32 %v1043, %v1056
    %v1059 = vrot.slane %v1057, 4
    %1060 = vrot.lane.b32.xlu0 %v1059, 64
    %v1061 = vpop.permute.xlu0 %1060
    %v1062 = vsel %vm300, %v1061, 0
    %1064 = vmatprep.subr.mxu0 0.0
    %1065 = vmatpush1.msra.mxu0 0.0
    %1066 = vmatprep.subr.mxu0 0.0
    %1067 = vmatpush1.msra.mxu0 0.0
    %1068 = vmatprep.subr.mxu0 0.0
    %1069 = vmatpush1.msra.mxu0 0.0
    %1070 = vmatprep.subr.mxu0 0.0
    %1071 = vmatpush1.msra.mxu0 0.0
    %1072 = vmatprep.subr.mxu0 0.0
    %1073 = vmatpush1.msra.mxu0 0.0
    %1074 = vmatprep.subr.mxu0 0.0
    %1075 = vmatpush1.msra.mxu0 0.0
    %1076 = vmatprep.subr.mxu0 0.0
    %1077 = vmatpush1.msra.mxu0 0.0
    %1078 = vmatprep.subr.mxu0 0.0
    %1079 = vmatpush1.msra.mxu0 0.0
    %1080 = vmatprep.subr.mxu0 %v299
    %1081 = vmatpush1.msra.mxu0 %v298
    %1082 = vmatprep.subr.mxu0 %v297
    %1083 = vmatpush1.msra.mxu0 %v296
    %1084 = vmatprep.subr.mxu0 %v295
    %1085 = vmatpush1.msra.mxu0 %v294
    %1086 = vmatprep.subr.mxu0 %v293
    %1087 = vmatpush1.msra.mxu0 %v292
    %1088 = vmatprep.subr.mxu0 %v291
    %1089 = vmatpush1.msra.mxu0 %v290
    %1090 = vmatprep.subr.mxu0 %v289
    %1091 = vmatpush1.msra.mxu0 %v288
    %1092 = vmatprep.subr.mxu0 %v287
    %1093 = vmatpush1.msra.mxu0 %v286
    %1094 = vmatprep.subr.mxu0 %v285
    %1095 = vmatpush1.msra.mxu0 %v284
    %1096 = vmatprep.subr.mxu0 0.0
    %1097 = vmatpush2.msra.mxu0 0.0
    %1098 = vmatprep.subr.mxu0 0.0
    %1099 = vmatpush2.msra.mxu0 0.0
    %1100 = vmatprep.subr.mxu0 0.0
    %1101 = vmatpush2.msra.mxu0 0.0
    %1102 = vmatprep.subr.mxu0 0.0
    %1103 = vmatpush2.msra.mxu0 0.0
    %1104 = vmatprep.subr.mxu0 0.0
    %1105 = vmatpush2.msra.mxu0 0.0
    %1106 = vmatprep.subr.mxu0 0.0
    %1107 = vmatpush2.msra.mxu0 0.0
    %1108 = vmatprep.subr.mxu0 0.0
    %1109 = vmatpush2.msra.mxu0 0.0
    %1110 = vmatprep.subr.mxu0 0.0
    %1111 = vmatpush2.msra.mxu0 0.0
    %1112 = vmatprep.subr.mxu0 0.0
    %1113 = vmatpush2.msra.mxu0 0.0
    %1114 = vmatprep.subr.mxu0 0.0
    %1115 = vmatpush2.msra.mxu0 0.0
    %1116 = vmatprep.subr.mxu0 0.0
    %1117 = vmatpush2.msra.mxu0 0.0
    %1118 = vmatprep.subr.mxu0 0.0
    %1119 = vmatpush2.msra.mxu0 0.0
    %1120 = vmatprep.subr.mxu0 0.0
    %1121 = vmatpush2.msra.mxu0 0.0
    %1122 = vmatprep.subr.mxu0 0.0
    %1123 = vmatpush2.msra.mxu0 0.0
    %1124 = vmatprep.subr.mxu0 0.0
    %1125 = vmatpush2.msra.mxu0 0.0
    %1126 = vmatprep.subr.mxu0 0.0
    %1127 = vmatpush2.msra.mxu0 0.0
    %1128 = vmatprep.mubr.f32.mxu0 0.0
    %1129 = vmatmul.mubr.f32.gmra.mxu0 %v1062
    %v1130 = vpop.f32.mrf.mxu0
    %v1131 = vadd.f32 0.0, %v1130
    %v1132 = vpop.f32.mrf.mxu0
    %v1133 = vadd.f32 0.0, %v1132
    %1134 = vdwg.mxu0
    %v1137 = vrot.slane %v1131, 2
    %v1138 = vrot.slane %v1133, 2
    %v1141 = vadd.f32 %v187, %v1137
    %v1142 = vadd.f32 %v189, %v1138
    %v1143 = vxor.u32 %v1141, 2147483648
    %v1144 = vxor.u32 %v1142, 2147483648
    %v1145 = vmul.f32 %v1143, 1.442695
    %v1146 = vpow.pop %v1145
    %v1147 = vmul.f32 %v1144, 1.442695
    %v1148 = vpow.pop %v1147
    %v1149 = vadd.f32 %v1146, 1.0
    %v1150 = vadd.f32 %v1148, 1.0
    %v1151 = vrcp.pop %v1149
    %v1152 = vmul.f32 1.0, %v1151
    %v1153 = vrcp.pop %v1150
    %v1154 = vmul.f32 1.0, %v1153
    %v1155 = vmul.f32 %v1154, 2.0
    %v1156 = vsub.f32 %v1155, 1.0
    %v1158 = vrot.slane %v1055, 6
    %v1160 = vmul.f32 %v1152, %v1158
    %v1161 = vmul.f32 %v1152, %v1156
    %1163 = vrot.lane.b32.xlu0 %v1161, 64
    %v1164 = vpop.permute.xlu0 %1163
    %v1166 = vadd.f32 %v1160, %v1164
    %v1167 = vtanh.pop %v1166
    %v1168 = vmul.f32 %v1154, %v1167
    %v1170 = vrot.slane %v1168, 6
    %v1172 = vrot.slane %v1168, 4
    %1173 = vrot.lane.b32.xlu0 %v1172, 96
    %v1174 = vpop.permute.xlu0 %1173
    %v1177 = vrot.slane %v1166, 2
    %1179 = vrot.lane.b32.xlu0 %v1166, 96
    %v1180 = vpop.permute.xlu0 %1179
    %vm1182 = vcmask 1041408
    %v1183 = vsel %vm1182, %v1170, %v1174
    %v1184 = vsel %vm109, %v1183, %v1177
    %vm1185 = vcmask 1045504
    %v1186 = vsel %vm1185, %v1184, %v1180
    %1188 = vrot.lane.b32.xlu0 %v1186, 64
    %v1189 = vpop.permute.xlu0 %1188
    %vm1191 = vcmask 261120
    %v1192 = vsel %vm1191, %v1189, 0.0
    %1193 = vadd.xlane.f32.xlu0 %v1192
    %v1194 = vpop.xlane.xlu0 %1193
    %v1195 = vrcp.pop 32.0
    %v1196 = vmul.f32 %v1194, %v1195
    %v1197 = vsub.f32 %v1186, %v1196
    %v1198 = vmul.f32 %v1197, %v1197
    %1200 = vrot.lane.b32.xlu0 %v1198, 64
    %v1201 = vpop.permute.xlu0 %1200
    %v1203 = vsel %vm1191, %v1201, 0.0
    %1204 = vadd.xlane.f32.xlu0 %v1203
    %v1205 = vpop.xlane.xlu0 %1204
    %v1206 = vmul.f32 %v1205, %v1195
    %v1207 = vadd.f32 %v1206, 1e-05
    %v1208 = vrsqrt.pop %v1207
    %v1209 = vmul.f32 %v1197, %v1208
    %v1210 = vld [vmem:[%s4] sm:$0x1]
    %v1212 = vlaneseq
    %v1213 = vshrl.u32 %v1212, 7
    %v1214 = vsub.s32 0, %v1213
    %v1215 = vrot.slane %v1210, %v1214
    %1216 = vrot.lane.b32.xlu0 %v1215, 64
    %v1217 = vpop.permute.xlu0 %1216
    %v1219 = vmul.f32 %v1209, %v1217
    %v1220 = vld [vmem:[%s5] sm:$0x1]
    %v1222 = vlaneseq
    %v1223 = vshrl.u32 %v1222, 7
    %v1224 = vsub.s32 0, %v1223
    %v1225 = vrot.slane %v1220, %v1224
    %1226 = vrot.lane.b32.xlu0 %v1225, 64
    %v1227 = vpop.permute.xlu0 %1226
    %v1229 = vadd.f32 %v1219, %v1227
    %v1231 = vrot.slane %v1229, 2
    %v1233 = vadd.f32 %v1229, %v1231
    %1234 = vrot.lane.b32.xlu0 %v1229, 64
    %v1235 = vpop.permute.xlu0 %1234
    %1238 = vrot.lane.b32.xlu0 %v1233, 96
    %v1239 = vpop.permute.xlu0 %1238
    %v1241 = vsel %vm1191, %v1235, %v1239
    %v1242 = vld [vmem:[%s10] sm:$0x3]
    %v1244 = vlaneseq
    %v1245 = vshrl.u32 %v1244, 7
    %v1246 = vsub.s32 0, %v1245
    %v1247 = vrot.slane %v1242, %v1246
    %v1248 = vlaneseq
    %v1249 = vshrl.u32 %v1248, 7
    %v1250 = vsub.s32 1, %v1249
    %v1251 = vrot.slane %v1242, %v1250
    %v1254 = vld [vmem:[#allocation4] sm:$0xff]
    %v1255 = vld [vmem:[#allocation4 + $0x8] sm:$0xff]
    %v1256 = vld [vmem:[#allocation4 + $0x10] sm:$0xff]
    %v1257 = vld [vmem:[#allocation4 + $0x18] sm:$0xff]
    %v1258 = vld [vmem:[#allocation4 + $0x20] sm:$0xff]
    %v1259 = vld [vmem:[#allocation4 + $0x28] sm:$0xff]
    %v1260 = vld [vmem:[#allocation4 + $0x30] sm:$0xff]
    %v1261 = vld [vmem:[#allocation4 + $0x38] sm:$0xff]
    %v1262 = vld [vmem:[#allocation4 + $0x40] sm:$0xff]
    %v1263 = vld [vmem:[#allocation4 + $0x48] sm:$0xff]
    %v1264 = vld [vmem:[#allocation4 + $0x50] sm:$0xff]
    %v1265 = vld [vmem:[#allocation4 + $0x58] sm:$0xff]
    %v1266 = vld [vmem:[#allocation4 + $0x60] sm:$0xff]
    %v1267 = vld [vmem:[#allocation4 + $0x68] sm:$0xff]
    %v1268 = vld [vmem:[#allocation4 + $0x70] sm:$0xff]
    %v1269 = vld [vmem:[#allocation4 + $0x78] sm:$0xff]
    %v1271 = vsel %vm300, %v1241, 0
    %1273 = vmatprep.subr.mxu0 0.0
    %1274 = vmatpush1.msra.mxu0 0.0
    %1275 = vmatprep.subr.mxu0 0.0
    %1276 = vmatpush1.msra.mxu0 0.0
    %1277 = vmatprep.subr.mxu0 0.0
    %1278 = vmatpush1.msra.mxu0 0.0
    %1279 = vmatprep.subr.mxu0 0.0
    %1280 = vmatpush1.msra.mxu0 0.0
    %1281 = vmatprep.subr.mxu0 0.0
    %1282 = vmatpush1.msra.mxu0 0.0
    %1283 = vmatprep.subr.mxu0 0.0
    %1284 = vmatpush1.msra.mxu0 0.0
    %1285 = vmatprep.subr.mxu0 0.0
    %1286 = vmatpush1.msra.mxu0 0.0
    %1287 = vmatprep.subr.mxu0 0.0
    %1288 = vmatpush1.msra.mxu0 0.0
    %1289 = vmatprep.subr.mxu0 %v1269
    %1290 = vmatpush1.msra.mxu0 %v1268
    %1291 = vmatprep.subr.mxu0 %v1267
    %1292 = vmatpush1.msra.mxu0 %v1266
    %1293 = vmatprep.subr.mxu0 %v1265
    %1294 = vmatpush1.msra.mxu0 %v1264
    %1295 = vmatprep.subr.mxu0 %v1263
    %1296 = vmatpush1.msra.mxu0 %v1262
    %1297 = vmatprep.subr.mxu0 %v1261
    %1298 = vmatpush1.msra.mxu0 %v1260
    %1299 = vmatprep.subr.mxu0 %v1259
    %1300 = vmatpush1.msra.mxu0 %v1258
    %1301 = vmatprep.subr.mxu0 %v1257
    %1302 = vmatpush1.msra.mxu0 %v1256
    %1303 = vmatprep.subr.mxu0 %v1255
    %1304 = vmatpush1.msra.mxu0 %v1254
    %1305 = vmatprep.subr.mxu0 0.0
    %1306 = vmatpush2.msra.mxu0 0.0
    %1307 = vmatprep.subr.mxu0 0.0
    %1308 = vmatpush2.msra.mxu0 0.0
    %1309 = vmatprep.subr.mxu0 0.0
    %1310 = vmatpush2.msra.mxu0 0.0
    %1311 = vmatprep.subr.mxu0 0.0
    %1312 = vmatpush2.msra.mxu0 0.0
    %1313 = vmatprep.subr.mxu0 0.0
    %1314 = vmatpush2.msra.mxu0 0.0
    %1315 = vmatprep.subr.mxu0 0.0
    %1316 = vmatpush2.msra.mxu0 0.0
    %1317 = vmatprep.subr.mxu0 0.0
    %1318 = vmatpush2.msra.mxu0 0.0
    %1319 = vmatprep.subr.mxu0 0.0
    %1320 = vmatpush2.msra.mxu0 0.0
    %1321 = vmatprep.subr.mxu0 0.0
    %1322 = vmatpush2.msra.mxu0 0.0
    %1323 = vmatprep.subr.mxu0 0.0
    %1324 = vmatpush2.msra.mxu0 0.0
    %1325 = vmatprep.subr.mxu0 0.0
    %1326 = vmatpush2.msra.mxu0 0.0
    %1327 = vmatprep.subr.mxu0 0.0
    %1328 = vmatpush2.msra.mxu0 0.0
    %1329 = vmatprep.subr.mxu0 0.0
    %1330 = vmatpush2.msra.mxu0 0.0
    %1331 = vmatprep.subr.mxu0 0.0
    %1332 = vmatpush2.msra.mxu0 0.0
    %1333 = vmatprep.subr.mxu0 0.0
    %1334 = vmatpush2.msra.mxu0 0.0
    %1335 = vmatprep.subr.mxu0 0.0
    %1336 = vmatpush2.msra.mxu0 0.0
    %1337 = vmatprep.mubr.f32.mxu0 0.0
    %1338 = vmatmul.mubr.f32.gmra.mxu0 %v1271
    %v1339 = vpop.f32.mrf.mxu0
    %v1340 = vadd.f32 0.0, %v1339
    %v1341 = vpop.f32.mrf.mxu0
    %v1342 = vadd.f32 0.0, %v1341
    %1343 = vdwg.mxu0
    %v1344 = vadd.f32 %v280, %v1340
    %v1345 = vadd.f32 %v282, %v1342
    %v1346 = vxor.u32 %v1344, 2147483648
    %v1347 = vxor.u32 %v1345, 2147483648
    %v1348 = vmul.f32 %v1346, 1.442695
    %v1349 = vpow.pop %v1348
    %v1350 = vmul.f32 %v1347, 1.442695
    %v1351 = vpow.pop %v1350
    %v1352 = vadd.f32 %v1349, 1.0
    %v1353 = vadd.f32 %v1351, 1.0
    %v1354 = vrcp.pop %v1352
    %v1355 = vmul.f32 1.0, %v1354
    %v1356 = vrcp.pop %v1353
    %v1357 = vmul.f32 1.0, %v1356
    %v1358 = vmul.f32 %v1357, 2.0
    %v1359 = vsub.f32 %v1358, 1.0
    %v1360 = vrot.slane %v1241, 4
    %1361 = vrot.lane.b32.xlu0 %v1360, 64
    %v1362 = vpop.permute.xlu0 %1361
    %v1364 = vmul.f32 %v1355, %v1362
    %v1365 = vmul.f32 %v1355, %v1359
    %1367 = vrot.lane.b32.xlu0 %v1365, 64
    %v1368 = vpop.permute.xlu0 %1367
    %v1370 = vadd.f32 %v1364, %v1368
    %v1371 = vtanh.pop %v1370
    %v1372 = vmul.f32 %v1357, %v1371
    %v1373 = vld [vmem:[#allocation6] sm:$0xff]
    %v1374 = vld [vmem:[#allocation6 + $0x8] sm:$0xff]
    %v1375 = vld [vmem:[#allocation6 + $0x10] sm:$0xff]
    %v1376 = vld [vmem:[#allocation6 + $0x18] sm:$0xff]
    %v1377 = vld [vmem:[#allocation6 + $0x20] sm:$0xff]
    %v1378 = vld [vmem:[#allocation6 + $0x28] sm:$0xff]
    %v1379 = vld [vmem:[#allocation6 + $0x30] sm:$0xff]
    %v1380 = vld [vmem:[#allocation6 + $0x38] sm:$0xff]
    %v1381 = vld [vmem:[#allocation6 + $0x40] sm:$0xff]
    %v1382 = vld [vmem:[#allocation6 + $0x48] sm:$0xff]
    %v1383 = vld [vmem:[#allocation6 + $0x50] sm:$0xff]
    %v1384 = vld [vmem:[#allocation6 + $0x58] sm:$0xff]
    %v1385 = vld [vmem:[#allocation6 + $0x60] sm:$0xff]
    %v1386 = vld [vmem:[#allocation6 + $0x68] sm:$0xff]
    %v1387 = vld [vmem:[#allocation6 + $0x70] sm:$0xff]
    %v1388 = vld [vmem:[#allocation6 + $0x78] sm:$0xff]
    %1390 = vrot.lane.b32.xlu0 %v1372, 64
    %v1391 = vpop.permute.xlu0 %1390
    %v1392 = vsel %vm300, %v1391, 0
    %1394 = vmatprep.subr.mxu0 0.0
    %1395 = vmatpush1.msra.mxu0 0.0
    %1396 = vmatprep.subr.mxu0 0.0
    %1397 = vmatpush1.msra.mxu0 0.0
    %1398 = vmatprep.subr.mxu0 0.0
    %1399 = vmatpush1.msra.mxu0 0.0
    %1400 = vmatprep.subr.mxu0 0.0
    %1401 = vmatpush1.msra.mxu0 0.0
    %1402 = vmatprep.subr.mxu0 0.0
    %1403 = vmatpush1.msra.mxu0 0.0
    %1404 = vmatprep.subr.mxu0 0.0
    %1405 = vmatpush1.msra.mxu0 0.0
    %1406 = vmatprep.subr.mxu0 0.0
    %1407 = vmatpush1.msra.mxu0 0.0
    %1408 = vmatprep.subr.mxu0 0.0
    %1409 = vmatpush1.msra.mxu0 0.0
    %1410 = vmatprep.subr.mxu0 %v1388
    %1411 = vmatpush1.msra.mxu0 %v1387
    %1412 = vmatprep.subr.mxu0 %v1386
    %1413 = vmatpush1.msra.mxu0 %v1385
    %1414 = vmatprep.subr.mxu0 %v1384
    %1415 = vmatpush1.msra.mxu0 %v1383
    %1416 = vmatprep.subr.mxu0 %v1382
    %1417 = vmatpush1.msra.mxu0 %v1381
    %1418 = vmatprep.subr.mxu0 %v1380
    %1419 = vmatpush1.msra.mxu0 %v1379
    %1420 = vmatprep.subr.mxu0 %v1378
    %1421 = vmatpush1.msra.mxu0 %v1377
    %1422 = vmatprep.subr.mxu0 %v1376
    %1423 = vmatpush1.msra.mxu0 %v1375
    %1424 = vmatprep.subr.mxu0 %v1374
    %1425 = vmatpush1.msra.mxu0 %v1373
    %1426 = vmatprep.subr.mxu0 0.0
    %1427 = vmatpush2.msra.mxu0 0.0
    %1428 = vmatprep.subr.mxu0 0.0
    %1429 = vmatpush2.msra.mxu0 0.0
    %1430 = vmatprep.subr.mxu0 0.0
    %1431 = vmatpush2.msra.mxu0 0.0
    %1432 = vmatprep.subr.mxu0 0.0
    %1433 = vmatpush2.msra.mxu0 0.0
    %1434 = vmatprep.subr.mxu0 0.0
    %1435 = vmatpush2.msra.mxu0 0.0
    %1436 = vmatprep.subr.mxu0 0.0
    %1437 = vmatpush2.msra.mxu0 0.0
    %1438 = vmatprep.subr.mxu0 0.0
    %1439 = vmatpush2.msra.mxu0 0.0
    %1440 = vmatprep.subr.mxu0 0.0
    %1441 = vmatpush2.msra.mxu0 0.0
    %1442 = vmatprep.subr.mxu0 0.0
    %1443 = vmatpush2.msra.mxu0 0.0
    %1444 = vmatprep.subr.mxu0 0.0
    %1445 = vmatpush2.msra.mxu0 0.0
    %1446 = vmatprep.subr.mxu0 0.0
    %1447 = vmatpush2.msra.mxu0 0.0
    %1448 = vmatprep.subr.mxu0 0.0
    %1449 = vmatpush2.msra.mxu0 0.0
    %1450 = vmatprep.subr.mxu0 0.0
    %1451 = vmatpush2.msra.mxu0 0.0
    %1452 = vmatprep.subr.mxu0 0.0
    %1453 = vmatpush2.msra.mxu0 0.0
    %1454 = vmatprep.subr.mxu0 0.0
    %1455 = vmatpush2.msra.mxu0 0.0
    %1456 = vmatprep.subr.mxu0 0.0
    %1457 = vmatpush2.msra.mxu0 0.0
    %1458 = vmatprep.mubr.f32.mxu0 0.0
    %1459 = vmatmul.mubr.f32.gmra.mxu0 %v1392
    %v1460 = vpop.f32.mrf.mxu0
    %v1461 = vadd.f32 0.0, %v1460
    %v1462 = vpop.f32.mrf.mxu0
    %v1463 = vadd.f32 0.0, %v1462
    %1464 = vdwg.mxu0
    %v1465 = vadd.f32 %v1247, %v1461
    %v1466 = vadd.f32 %v1251, %v1463
    %v1467 = vxor.u32 %v1465, 2147483648
    %v1468 = vxor.u32 %v1466, 2147483648
    %v1469 = vmul.f32 %v1467, 1.442695
    %v1470 = vpow.pop %v1469
    %v1471 = vmul.f32 %v1468, 1.442695
    %v1472 = vpow.pop %v1471
    %v1473 = vadd.f32 %v1470, 1.0
    %v1474 = vadd.f32 %v1472, 1.0
    %v1475 = vrcp.pop %v1473
    %v1476 = vmul.f32 1.0, %v1475
    %v1477 = vrcp.pop %v1474
    %v1478 = vmul.f32 1.0, %v1477
    %v1479 = vmul.f32 %v1478, 2.0
    %v1480 = vsub.f32 %v1479, 1.0
    %v1481 = vmul.f32 %v1476, %v1370
    %v1482 = vmul.f32 %v1476, %v1480
    %1484 = vrot.lane.b32.xlu0 %v1482, 64
    %v1485 = vpop.permute.xlu0 %1484
    %v1487 = vadd.f32 %v1481, %v1485
    %v1488 = vtanh.pop %v1487
    %v1489 = vmul.f32 %v1478, %v1488
    %1491 = vrot.lane.b32.xlu0 %v1489, 64
    %v1492 = vpop.permute.xlu0 %1491
    %v1493 = vsel %vm300, %v1492, 0
    %1495 = vmatprep.subr.mxu0 0.0
    %1496 = vmatpush1.msra.mxu0 0.0
    %1497 = vmatprep.subr.mxu0 0.0
    %1498 = vmatpush1.msra.mxu0 0.0
    %1499 = vmatprep.subr.mxu0 0.0
    %1500 = vmatpush1.msra.mxu0 0.0
    %1501 = vmatprep.subr.mxu0 0.0
    %1502 = vmatpush1.msra.mxu0 0.0
    %1503 = vmatprep.subr.mxu0 0.0
    %1504 = vmatpush1.msra.mxu0 0.0
    %1505 = vmatprep.subr.mxu0 0.0
    %1506 = vmatpush1.msra.mxu0 0.0
    %1507 = vmatprep.subr.mxu0 0.0
    %1508 = vmatpush1.msra.mxu0 0.0
    %1509 = vmatprep.subr.mxu0 0.0
    %1510 = vmatpush1.msra.mxu0 0.0
    %1511 = vmatprep.subr.mxu0 %v1388
    %1512 = vmatpush1.msra.mxu0 %v1387
    %1513 = vmatprep.subr.mxu0 %v1386
    %1514 = vmatpush1.msra.mxu0 %v1385
    %1515 = vmatprep.subr.mxu0 %v1384
    %1516 = vmatpush1.msra.mxu0 %v1383
    %1517 = vmatprep.subr.mxu0 %v1382
    %1518 = vmatpush1.msra.mxu0 %v1381
    %1519 = vmatprep.subr.mxu0 %v1380
    %1520 = vmatpush1.msra.mxu0 %v1379
    %1521 = vmatprep.subr.mxu0 %v1378
    %1522 = vmatpush1.msra.mxu0 %v1377
    %1523 = vmatprep.subr.mxu0 %v1376
    %1524 = vmatpush1.msra.mxu0 %v1375
    %1525 = vmatprep.subr.mxu0 %v1374
    %1526 = vmatpush1.msra.mxu0 %v1373
    %1527 = vmatprep.subr.mxu0 0.0
    %1528 = vmatpush2.msra.mxu0 0.0
    %1529 = vmatprep.subr.mxu0 0.0
    %1530 = vmatpush2.msra.mxu0 0.0
    %1531 = vmatprep.subr.mxu0 0.0
    %1532 = vmatpush2.msra.mxu0 0.0
    %1533 = vmatprep.subr.mxu0 0.0
    %1534 = vmatpush2.msra.mxu0 0.0
    %1535 = vmatprep.subr.mxu0 0.0
    %1536 = vmatpush2.msra.mxu0 0.0
    %1537 = vmatprep.subr.mxu0 0.0
    %1538 = vmatpush2.msra.mxu0 0.0
    %1539 = vmatprep.subr.mxu0 0.0
    %1540 = vmatpush2.msra.mxu0 0.0
    %1541 = vmatprep.subr.mxu0 0.0
    %1542 = vmatpush2.msra.mxu0 0.0
    %1543 = vmatprep.subr.mxu0 0.0
    %1544 = vmatpush2.msra.mxu0 0.0
    %1545 = vmatprep.subr.mxu0 0.0
    %1546 = vmatpush2.msra.mxu0 0.0
    %1547 = vmatprep.subr.mxu0 0.0
    %1548 = vmatpush2.msra.mxu0 0.0
    %1549 = vmatprep.subr.mxu0 0.0
    %1550 = vmatpush2.msra.mxu0 0.0
    %1551 = vmatprep.subr.mxu0 0.0
    %1552 = vmatpush2.msra.mxu0 0.0
    %1553 = vmatprep.subr.mxu0 0.0
    %1554 = vmatpush2.msra.mxu0 0.0
    %1555 = vmatprep.subr.mxu0 0.0
    %1556 = vmatpush2.msra.mxu0 0.0
    %1557 = vmatprep.subr.mxu0 0.0
    %1558 = vmatpush2.msra.mxu0 0.0
    %1559 = vmatprep.mubr.f32.mxu0 0.0
    %1560 = vmatmul.mubr.f32.gmra.mxu0 %v1493
    %v1561 = vpop.f32.mrf.mxu0
    %v1562 = vadd.f32 0.0, %v1561
    %v1563 = vpop.f32.mrf.mxu0
    %v1564 = vadd.f32 0.0, %v1563
    %1565 = vdwg.mxu0
    %v1566 = vadd.f32 %v1247, %v1562
    %v1567 = vadd.f32 %v1251, %v1564
    %v1568 = vxor.u32 %v1566, 2147483648
    %v1569 = vxor.u32 %v1567, 2147483648
    %v1570 = vmul.f32 %v1568, 1.442695
    %v1571 = vpow.pop %v1570
    %v1572 = vmul.f32 %v1569, 1.442695
    %v1573 = vpow.pop %v1572
    %v1574 = vadd.f32 %v1571, 1.0
    %v1575 = vadd.f32 %v1573, 1.0
    %v1576 = vrcp.pop %v1574
    %v1577 = vmul.f32 1.0, %v1576
    %v1578 = vrcp.pop %v1575
    %v1579 = vmul.f32 1.0, %v1578
    %v1580 = vmul.f32 %v1579, 2.0
    %v1581 = vsub.f32 %v1580, 1.0
    %v1582 = vmul.f32 %v1577, %v1487
    %v1583 = vmul.f32 %v1577, %v1581
    %1585 = vrot.lane.b32.xlu0 %v1583, 64
    %v1586 = vpop.permute.xlu0 %1585
    %v1588 = vadd.f32 %v1582, %v1586
    %v1589 = vtanh.pop %v1588
    %v1590 = vmul.f32 %v1579, %v1589
    %1592 = vrot.lane.b32.xlu0 %v1590, 64
    %v1593 = vpop.permute.xlu0 %1592
    %v1594 = vsel %vm300, %v1593, 0
    %1596 = vmatprep.subr.mxu0 0.0
    %1597 = vmatpush1.msra.mxu0 0.0
    %1598 = vmatprep.subr.mxu0 0.0
    %1599 = vmatpush1.msra.mxu0 0.0
    %1600 = vmatprep.subr.mxu0 0.0
    %1601 = vmatpush1.msra.mxu0 0.0
    %1602 = vmatprep.subr.mxu0 0.0
    %1603 = vmatpush1.msra.mxu0 0.0
    %1604 = vmatprep.subr.mxu0 0.0
    %1605 = vmatpush1.msra.mxu0 0.0
    %1606 = vmatprep.subr.mxu0 0.0
    %1607 = vmatpush1.msra.mxu0 0.0
    %1608 = vmatprep.subr.mxu0 0.0
    %1609 = vmatpush1.msra.mxu0 0.0
    %1610 = vmatprep.subr.mxu0 0.0
    %1611 = vmatpush1.msra.mxu0 0.0
    %1612 = vmatprep.subr.mxu0 %v1388
    %1613 = vmatpush1.msra.mxu0 %v1387
    %1614 = vmatprep.subr.mxu0 %v1386
    %1615 = vmatpush1.msra.mxu0 %v1385
    %1616 = vmatprep.subr.mxu0 %v1384
    %1617 = vmatpush1.msra.mxu0 %v1383
    %1618 = vmatprep.subr.mxu0 %v1382
    %1619 = vmatpush1.msra.mxu0 %v1381
    %1620 = vmatprep.subr.mxu0 %v1380
    %1621 = vmatpush1.msra.mxu0 %v1379
    %1622 = vmatprep.subr.mxu0 %v1378
    %1623 = vmatpush1.msra.mxu0 %v1377
    %1624 = vmatprep.subr.mxu0 %v1376
    %1625 = vmatpush1.msra.mxu0 %v1375
    %1626 = vmatprep.subr.mxu0 %v1374
    %1627 = vmatpush1.msra.mxu0 %v1373
    %1628 = vmatprep.subr.mxu0 0.0
    %1629 = vmatpush2.msra.mxu0 0.0
    %1630 = vmatprep.subr.mxu0 0.0
    %1631 = vmatpush2.msra.mxu0 0.0
    %1632 = vmatprep.subr.mxu0 0.0
    %1633 = vmatpush2.msra.mxu0 0.0
    %1634 = vmatprep.subr.mxu0 0.0
    %1635 = vmatpush2.msra.mxu0 0.0
    %1636 = vmatprep.subr.mxu0 0.0
    %1637 = vmatpush2.msra.mxu0 0.0
    %1638 = vmatprep.subr.mxu0 0.0
    %1639 = vmatpush2.msra.mxu0 0.0
    %1640 = vmatprep.subr.mxu0 0.0
    %1641 = vmatpush2.msra.mxu0 0.0
    %1642 = vmatprep.subr.mxu0 0.0
    %1643 = vmatpush2.msra.mxu0 0.0
    %1644 = vmatprep.subr.mxu0 0.0
    %1645 = vmatpush2.msra.mxu0 0.0
    %1646 = vmatprep.subr.mxu0 0.0
    %1647 = vmatpush2.msra.mxu0 0.0
    %1648 = vmatprep.subr.mxu0 0.0
    %1649 = vmatpush2.msra.mxu0 0.0
    %1650 = vmatprep.subr.mxu0 0.0
    %1651 = vmatpush2.msra.mxu0 0.0
    %1652 = vmatprep.subr.mxu0 0.0
    %1653 = vmatpush2.msra.mxu0 0.0
    %1654 = vmatprep.subr.mxu0 0.0
    %1655 = vmatpush2.msra.mxu0 0.0
    %1656 = vmatprep.subr.mxu0 0.0
    %1657 = vmatpush2.msra.mxu0 0.0
    %1658 = vmatprep.subr.mxu0 0.0
    %1659 = vmatpush2.msra.mxu0 0.0
    %1660 = vmatprep.mubr.f32.mxu0 0.0
    %1661 = vmatmul.mubr.f32.gmra.mxu0 %v1594
    %v1662 = vpop.f32.mrf.mxu0
    %v1663 = vadd.f32 0.0, %v1662
    %v1664 = vpop.f32.mrf.mxu0
    %v1665 = vadd.f32 0.0, %v1664
    %1666 = vdwg.mxu0
    %v1667 = vadd.f32 %v1247, %v1663
    %v1668 = vadd.f32 %v1251, %v1665
    %v1669 = vxor.u32 %v1667, 2147483648
    %v1670 = vxor.u32 %v1668, 2147483648
    %v1671 = vmul.f32 %v1669, 1.442695
    %v1672 = vpow.pop %v1671
    %v1673 = vmul.f32 %v1670, 1.442695
    %v1674 = vpow.pop %v1673
    %v1675 = vadd.f32 %v1672, 1.0
    %v1676 = vadd.f32 %v1674, 1.0
    %v1677 = vrcp.pop %v1675
    %v1678 = vmul.f32 1.0, %v1677
    %v1679 = vrcp.pop %v1676
    %v1680 = vmul.f32 1.0, %v1679
    %v1681 = vmul.f32 %v1680, 2.0
    %v1682 = vsub.f32 %v1681, 1.0
    %v1683 = vmul.f32 %v1678, %v1588
    %v1684 = vmul.f32 %v1678, %v1682
    %1686 = vrot.lane.b32.xlu0 %v1684, 64
    %v1687 = vpop.permute.xlu0 %1686
    %v1689 = vadd.f32 %v1683, %v1687
    %v1690 = vtanh.pop %v1689
    %v1691 = vmul.f32 %v1680, %v1690
    %1693 = vrot.lane.b32.xlu0 %v1691, 64
    %v1694 = vpop.permute.xlu0 %1693
    %v1695 = vsel %vm300, %v1694, 0
    %1697 = vmatprep.subr.mxu0 0.0
    %1698 = vmatpush1.msra.mxu0 0.0
    %1699 = vmatprep.subr.mxu0 0.0
    %1700 = vmatpush1.msra.mxu0 0.0
    %1701 = vmatprep.subr.mxu0 0.0
    %1702 = vmatpush1.msra.mxu0 0.0
    %1703 = vmatprep.subr.mxu0 0.0
    %1704 = vmatpush1.msra.mxu0 0.0
    %1705 = vmatprep.subr.mxu0 0.0
    %1706 = vmatpush1.msra.mxu0 0.0
    %1707 = vmatprep.subr.mxu0 0.0
    %1708 = vmatpush1.msra.mxu0 0.0
    %1709 = vmatprep.subr.mxu0 0.0
    %1710 = vmatpush1.msra.mxu0 0.0
    %1711 = vmatprep.subr.mxu0 0.0
    %1712 = vmatpush1.msra.mxu0 0.0
    %1713 = vmatprep.subr.mxu0 %v1388
    %1714 = vmatpush1.msra.mxu0 %v1387
    %1715 = vmatprep.subr.mxu0 %v1386
    %1716 = vmatpush1.msra.mxu0 %v1385
    %1717 = vmatprep.subr.mxu0 %v1384
    %1718 = vmatpush1.msra.mxu0 %v1383
    %1719 = vmatprep.subr.mxu0 %v1382
    %1720 = vmatpush1.msra.mxu0 %v1381
    %1721 = vmatprep.subr.mxu0 %v1380
    %1722 = vmatpush1.msra.mxu0 %v1379
    %1723 = vmatprep.subr.mxu0 %v1378
    %1724 = vmatpush1.msra.mxu0 %v1377
    %1725 = vmatprep.subr.mxu0 %v1376
    %1726 = vmatpush1.msra.mxu0 %v1375
    %1727 = vmatprep.subr.mxu0 %v1374
    %1728 = vmatpush1.msra.mxu0 %v1373
    %1729 = vmatprep.subr.mxu0 0.0
    %1730 = vmatpush2.msra.mxu0 0.0
    %1731 = vmatprep.subr.mxu0 0.0
    %1732 = vmatpush2.msra.mxu0 0.0
    %1733 = vmatprep.subr.mxu0 0.0
    %1734 = vmatpush2.msra.mxu0 0.0
    %1735 = vmatprep.subr.mxu0 0.0
    %1736 = vmatpush2.msra.mxu0 0.0
    %1737 = vmatprep.subr.mxu0 0.0
    %1738 = vmatpush2.msra.mxu0 0.0
    %1739 = vmatprep.subr.mxu0 0.0
    %1740 = vmatpush2.msra.mxu0 0.0
    %1741 = vmatprep.subr.mxu0 0.0
    %1742 = vmatpush2.msra.mxu0 0.0
    %1743 = vmatprep.subr.mxu0 0.0
    %1744 = vmatpush2.msra.mxu0 0.0
    %1745 = vmatprep.subr.mxu0 0.0
    %1746 = vmatpush2.msra.mxu0 0.0
    %1747 = vmatprep.subr.mxu0 0.0
    %1748 = vmatpush2.msra.mxu0 0.0
    %1749 = vmatprep.subr.mxu0 0.0
    %1750 = vmatpush2.msra.mxu0 0.0
    %1751 = vmatprep.subr.mxu0 0.0
    %1752 = vmatpush2.msra.mxu0 0.0
    %1753 = vmatprep.subr.mxu0 0.0
    %1754 = vmatpush2.msra.mxu0 0.0
    %1755 = vmatprep.subr.mxu0 0.0
    %1756 = vmatpush2.msra.mxu0 0.0
    %1757 = vmatprep.subr.mxu0 0.0
    %1758 = vmatpush2.msra.mxu0 0.0
    %1759 = vmatprep.subr.mxu0 0.0
    %1760 = vmatpush2.msra.mxu0 0.0
    %1761 = vmatprep.mubr.f32.mxu0 0.0
    %1762 = vmatmul.mubr.f32.gmra.mxu0 %v1695
    %v1763 = vpop.f32.mrf.mxu0
    %v1764 = vadd.f32 0.0, %v1763
    %v1765 = vpop.f32.mrf.mxu0
    %v1766 = vadd.f32 0.0, %v1765
    %1767 = vdwg.mxu0
    %v1768 = vadd.f32 %v1247, %v1764
    %v1769 = vadd.f32 %v1251, %v1766
    %v1770 = vxor.u32 %v1768, 2147483648
    %v1771 = vxor.u32 %v1769, 2147483648
    %v1772 = vmul.f32 %v1770, 1.442695
    %v1773 = vpow.pop %v1772
    %v1774 = vmul.f32 %v1771, 1.442695
    %v1775 = vpow.pop %v1774
    %v1776 = vadd.f32 %v1773, 1.0
    %v1777 = vadd.f32 %v1775, 1.0
    %v1778 = vrcp.pop %v1776
    %v1779 = vmul.f32 1.0, %v1778
    %v1780 = vrcp.pop %v1777
    %v1781 = vmul.f32 1.0, %v1780
    %v1782 = vmul.f32 %v1781, 2.0
    %v1783 = vsub.f32 %v1782, 1.0
    %v1784 = vmul.f32 %v1779, %v1689
    %v1785 = vmul.f32 %v1779, %v1783
    %1787 = vrot.lane.b32.xlu0 %v1785, 64
    %v1788 = vpop.permute.xlu0 %1787
    %v1790 = vadd.f32 %v1784, %v1788
    %v1791 = vtanh.pop %v1790
    %v1792 = vmul.f32 %v1781, %v1791
    %1794 = vrot.lane.b32.xlu0 %v1792, 64
    %v1795 = vpop.permute.xlu0 %1794
    %v1796 = vsel %vm300, %v1795, 0
    %1798 = vmatprep.subr.mxu0 0.0
    %1799 = vmatpush1.msra.mxu0 0.0
    %1800 = vmatprep.subr.mxu0 0.0
    %1801 = vmatpush1.msra.mxu0 0.0
    %1802 = vmatprep.subr.mxu0 0.0
    %1803 = vmatpush1.msra.mxu0 0.0
    %1804 = vmatprep.subr.mxu0 0.0
    %1805 = vmatpush1.msra.mxu0 0.0
    %1806 = vmatprep.subr.mxu0 0.0
    %1807 = vmatpush1.msra.mxu0 0.0
    %1808 = vmatprep.subr.mxu0 0.0
    %1809 = vmatpush1.msra.mxu0 0.0
    %1810 = vmatprep.subr.mxu0 0.0
    %1811 = vmatpush1.msra.mxu0 0.0
    %1812 = vmatprep.subr.mxu0 0.0
    %1813 = vmatpush1.msra.mxu0 0.0
    %1814 = vmatprep.subr.mxu0 %v1388
    %1815 = vmatpush1.msra.mxu0 %v1387
    %1816 = vmatprep.subr.mxu0 %v1386
    %1817 = vmatpush1.msra.mxu0 %v1385
    %1818 = vmatprep.subr.mxu0 %v1384
    %1819 = vmatpush1.msra.mxu0 %v1383
    %1820 = vmatprep.subr.mxu0 %v1382
    %1821 = vmatpush1.msra.mxu0 %v1381
    %1822 = vmatprep.subr.mxu0 %v1380
    %1823 = vmatpush1.msra.mxu0 %v1379
    %1824 = vmatprep.subr.mxu0 %v1378
    %1825 = vmatpush1.msra.mxu0 %v1377
    %1826 = vmatprep.subr.mxu0 %v1376
    %1827 = vmatpush1.msra.mxu0 %v1375
    %1828 = vmatprep.subr.mxu0 %v1374
    %1829 = vmatpush1.msra.mxu0 %v1373
    %1830 = vmatprep.subr.mxu0 0.0
    %1831 = vmatpush2.msra.mxu0 0.0
    %1832 = vmatprep.subr.mxu0 0.0
    %1833 = vmatpush2.msra.mxu0 0.0
    %1834 = vmatprep.subr.mxu0 0.0
    %1835 = vmatpush2.msra.mxu0 0.0
    %1836 = vmatprep.subr.mxu0 0.0
    %1837 = vmatpush2.msra.mxu0 0.0
    %1838 = vmatprep.subr.mxu0 0.0
    %1839 = vmatpush2.msra.mxu0 0.0
    %1840 = vmatprep.subr.mxu0 0.0
    %1841 = vmatpush2.msra.mxu0 0.0
    %1842 = vmatprep.subr.mxu0 0.0
    %1843 = vmatpush2.msra.mxu0 0.0
    %1844 = vmatprep.subr.mxu0 0.0
    %1845 = vmatpush2.msra.mxu0 0.0
    %1846 = vmatprep.subr.mxu0 0.0
    %1847 = vmatpush2.msra.mxu0 0.0
    %1848 = vmatprep.subr.mxu0 0.0
    %1849 = vmatpush2.msra.mxu0 0.0
    %1850 = vmatprep.subr.mxu0 0.0
    %1851 = vmatpush2.msra.mxu0 0.0
    %1852 = vmatprep.subr.mxu0 0.0
    %1853 = vmatpush2.msra.mxu0 0.0
    %1854 = vmatprep.subr.mxu0 0.0
    %1855 = vmatpush2.msra.mxu0 0.0
    %1856 = vmatprep.subr.mxu0 0.0
    %1857 = vmatpush2.msra.mxu0 0.0
    %1858 = vmatprep.subr.mxu0 0.0
    %1859 = vmatpush2.msra.mxu0 0.0
    %1860 = vmatprep.subr.mxu0 0.0
    %1861 = vmatpush2.msra.mxu0 0.0
    %1862 = vmatprep.mubr.f32.mxu0 0.0
    %1863 = vmatmul.mubr.f32.gmra.mxu0 %v1796
    %v1864 = vpop.f32.mrf.mxu0
    %v1865 = vadd.f32 0.0, %v1864
    %v1866 = vpop.f32.mrf.mxu0
    %v1867 = vadd.f32 0.0, %v1866
    %1868 = vdwg.mxu0
    %v1869 = vadd.f32 %v1247, %v1865
    %v1870 = vadd.f32 %v1251, %v1867
    %v1871 = vxor.u32 %v1869, 2147483648
    %v1872 = vxor.u32 %v1870, 2147483648
    %v1873 = vmul.f32 %v1871, 1.442695
    %v1874 = vpow.pop %v1873
    %v1875 = vmul.f32 %v1872, 1.442695
    %v1876 = vpow.pop %v1875
    %v1877 = vadd.f32 %v1874, 1.0
    %v1878 = vadd.f32 %v1876, 1.0
    %v1879 = vrcp.pop %v1877
    %v1880 = vmul.f32 1.0, %v1879
    %v1881 = vrcp.pop %v1878
    %v1882 = vmul.f32 1.0, %v1881
    %v1883 = vmul.f32 %v1882, 2.0
    %v1884 = vsub.f32 %v1883, 1.0
    %v1885 = vmul.f32 %v1880, %v1790
    %v1886 = vmul.f32 %v1880, %v1884
    %1888 = vrot.lane.b32.xlu0 %v1886, 64
    %v1889 = vpop.permute.xlu0 %1888
    %v1891 = vadd.f32 %v1885, %v1889
    %v1892 = vtanh.pop %v1891
    %v1893 = vmul.f32 %v1882, %v1892
    %1895 = vrot.lane.b32.xlu0 %v1893, 64
    %v1896 = vpop.permute.xlu0 %1895
    %v1897 = vsel %vm300, %v1896, 0
    %1899 = vmatprep.subr.mxu0 0.0
    %1900 = vmatpush1.msra.mxu0 0.0
    %1901 = vmatprep.subr.mxu0 0.0
    %1902 = vmatpush1.msra.mxu0 0.0
    %1903 = vmatprep.subr.mxu0 0.0
    %1904 = vmatpush1.msra.mxu0 0.0
    %1905 = vmatprep.subr.mxu0 0.0
    %1906 = vmatpush1.msra.mxu0 0.0
    %1907 = vmatprep.subr.mxu0 0.0
    %1908 = vmatpush1.msra.mxu0 0.0
    %1909 = vmatprep.subr.mxu0 0.0
    %1910 = vmatpush1.msra.mxu0 0.0
    %1911 = vmatprep.subr.mxu0 0.0
    %1912 = vmatpush1.msra.mxu0 0.0
    %1913 = vmatprep.subr.mxu0 0.0
    %1914 = vmatpush1.msra.mxu0 0.0
    %1915 = vmatprep.subr.mxu0 %v1388
    %1916 = vmatpush1.msra.mxu0 %v1387
    %1917 = vmatprep.subr.mxu0 %v1386
    %1918 = vmatpush1.msra.mxu0 %v1385
    %1919 = vmatprep.subr.mxu0 %v1384
    %1920 = vmatpush1.msra.mxu0 %v1383
    %1921 = vmatprep.subr.mxu0 %v1382
    %1922 = vmatpush1.msra.mxu0 %v1381
    %1923 = vmatprep.subr.mxu0 %v1380
    %1924 = vmatpush1.msra.mxu0 %v1379
    %1925 = vmatprep.subr.mxu0 %v1378
    %1926 = vmatpush1.msra.mxu0 %v1377
    %1927 = vmatprep.subr.mxu0 %v1376
    %1928 = vmatpush1.msra.mxu0 %v1375
    %1929 = vmatprep.subr.mxu0 %v1374
    %1930 = vmatpush1.msra.mxu0 %v1373
    %1931 = vmatprep.subr.mxu0 0.0
    %1932 = vmatpush2.msra.mxu0 0.0
    %1933 = vmatprep.subr.mxu0 0.0
    %1934 = vmatpush2.msra.mxu0 0.0
    %1935 = vmatprep.subr.mxu0 0.0
    %1936 = vmatpush2.msra.mxu0 0.0
    %1937 = vmatprep.subr.mxu0 0.0
    %1938 = vmatpush2.msra.mxu0 0.0
    %1939 = vmatprep.subr.mxu0 0.0
    %1940 = vmatpush2.msra.mxu0 0.0
    %1941 = vmatprep.subr.mxu0 0.0
    %1942 = vmatpush2.msra.mxu0 0.0
    %1943 = vmatprep.subr.mxu0 0.0
    %1944 = vmatpush2.msra.mxu0 0.0
    %1945 = vmatprep.subr.mxu0 0.0
    %1946 = vmatpush2.msra.mxu0 0.0
    %1947 = vmatprep.subr.mxu0 0.0
    %1948 = vmatpush2.msra.mxu0 0.0
    %1949 = vmatprep.subr.mxu0 0.0
    %1950 = vmatpush2.msra.mxu0 0.0
    %1951 = vmatprep.subr.mxu0 0.0
    %1952 = vmatpush2.msra.mxu0 0.0
    %1953 = vmatprep.subr.mxu0 0.0
    %1954 = vmatpush2.msra.mxu0 0.0
    %1955 = vmatprep.subr.mxu0 0.0
    %1956 = vmatpush2.msra.mxu0 0.0
    %1957 = vmatprep.subr.mxu0 0.0
    %1958 = vmatpush2.msra.mxu0 0.0
    %1959 = vmatprep.subr.mxu0 0.0
    %1960 = vmatpush2.msra.mxu0 0.0
    %1961 = vmatprep.subr.mxu0 0.0
    %1962 = vmatpush2.msra.mxu0 0.0
    %1963 = vmatprep.mubr.f32.mxu0 0.0
    %1964 = vmatmul.mubr.f32.gmra.mxu0 %v1897
    %v1965 = vpop.f32.mrf.mxu0
    %v1966 = vadd.f32 0.0, %v1965
    %v1967 = vpop.f32.mrf.mxu0
    %v1968 = vadd.f32 0.0, %v1967
    %1969 = vdwg.mxu0
    %v1970 = vadd.f32 %v1247, %v1966
    %v1971 = vadd.f32 %v1251, %v1968
    %v1972 = vxor.u32 %v1970, 2147483648
    %v1973 = vxor.u32 %v1971, 2147483648
    %v1974 = vmul.f32 %v1972, 1.442695
    %v1975 = vpow.pop %v1974
    %v1976 = vmul.f32 %v1973, 1.442695
    %v1977 = vpow.pop %v1976
    %v1978 = vadd.f32 %v1975, 1.0
    %v1979 = vadd.f32 %v1977, 1.0
    %v1980 = vrcp.pop %v1978
    %v1981 = vmul.f32 1.0, %v1980
    %v1982 = vrcp.pop %v1979
    %v1983 = vmul.f32 1.0, %v1982
    %v1984 = vmul.f32 %v1983, 2.0
    %v1985 = vsub.f32 %v1984, 1.0
    %v1986 = vmul.f32 %v1981, %v1891
    %v1987 = vmul.f32 %v1981, %v1985
    %1989 = vrot.lane.b32.xlu0 %v1987, 64
    %v1990 = vpop.permute.xlu0 %1989
    %v1992 = vadd.f32 %v1986, %v1990
    %v1993 = vtanh.pop %v1992
    %v1994 = vmul.f32 %v1983, %v1993
    %1996 = vrot.lane.b32.xlu0 %v1994, 64
    %v1997 = vpop.permute.xlu0 %1996
    %v1998 = vsel %vm300, %v1997, 0
    %2000 = vmatprep.subr.mxu0 0.0
    %2001 = vmatpush1.msra.mxu0 0.0
    %2002 = vmatprep.subr.mxu0 0.0
    %2003 = vmatpush1.msra.mxu0 0.0
    %2004 = vmatprep.subr.mxu0 0.0
    %2005 = vmatpush1.msra.mxu0 0.0
    %2006 = vmatprep.subr.mxu0 0.0
    %2007 = vmatpush1.msra.mxu0 0.0
    %2008 = vmatprep.subr.mxu0 0.0
    %2009 = vmatpush1.msra.mxu0 0.0
    %2010 = vmatprep.subr.mxu0 0.0
    %2011 = vmatpush1.msra.mxu0 0.0
    %2012 = vmatprep.subr.mxu0 0.0
    %2013 = vmatpush1.msra.mxu0 0.0
    %2014 = vmatprep.subr.mxu0 0.0
    %2015 = vmatpush1.msra.mxu0 0.0
    %2016 = vmatprep.subr.mxu0 %v1388
    %2017 = vmatpush1.msra.mxu0 %v1387
    %2018 = vmatprep.subr.mxu0 %v1386
    %2019 = vmatpush1.msra.mxu0 %v1385
    %2020 = vmatprep.subr.mxu0 %v1384
    %2021 = vmatpush1.msra.mxu0 %v1383
    %2022 = vmatprep.subr.mxu0 %v1382
    %2023 = vmatpush1.msra.mxu0 %v1381
    %2024 = vmatprep.subr.mxu0 %v1380
    %2025 = vmatpush1.msra.mxu0 %v1379
    %2026 = vmatprep.subr.mxu0 %v1378
    %2027 = vmatpush1.msra.mxu0 %v1377
    %2028 = vmatprep.subr.mxu0 %v1376
    %2029 = vmatpush1.msra.mxu0 %v1375
    %2030 = vmatprep.subr.mxu0 %v1374
    %2031 = vmatpush1.msra.mxu0 %v1373
    %2032 = vmatprep.subr.mxu0 0.0
    %2033 = vmatpush2.msra.mxu0 0.0
    %2034 = vmatprep.subr.mxu0 0.0
    %2035 = vmatpush2.msra.mxu0 0.0
    %2036 = vmatprep.subr.mxu0 0.0
    %2037 = vmatpush2.msra.mxu0 0.0
    %2038 = vmatprep.subr.mxu0 0.0
    %2039 = vmatpush2.msra.mxu0 0.0
    %2040 = vmatprep.subr.mxu0 0.0
    %2041 = vmatpush2.msra.mxu0 0.0
    %2042 = vmatprep.subr.mxu0 0.0
    %2043 = vmatpush2.msra.mxu0 0.0
    %2044 = vmatprep.subr.mxu0 0.0
    %2045 = vmatpush2.msra.mxu0 0.0
    %2046 = vmatprep.subr.mxu0 0.0
    %2047 = vmatpush2.msra.mxu0 0.0
    %2048 = vmatprep.subr.mxu0 0.0
    %2049 = vmatpush2.msra.mxu0 0.0
    %2050 = vmatprep.subr.mxu0 0.0
    %2051 = vmatpush2.msra.mxu0 0.0
    %2052 = vmatprep.subr.mxu0 0.0
    %2053 = vmatpush2.msra.mxu0 0.0
    %2054 = vmatprep.subr.mxu0 0.0
    %2055 = vmatpush2.msra.mxu0 0.0
    %2056 = vmatprep.subr.mxu0 0.0
    %2057 = vmatpush2.msra.mxu0 0.0
    %2058 = vmatprep.subr.mxu0 0.0
    %2059 = vmatpush2.msra.mxu0 0.0
    %2060 = vmatprep.subr.mxu0 0.0
    %2061 = vmatpush2.msra.mxu0 0.0
    %2062 = vmatprep.subr.mxu0 0.0
    %2063 = vmatpush2.msra.mxu0 0.0
    %2064 = vmatprep.mubr.f32.mxu0 0.0
    %2065 = vmatmul.mubr.f32.gmra.mxu0 %v1998
    %v2066 = vpop.f32.mrf.mxu0
    %v2067 = vadd.f32 0.0, %v2066
    %v2068 = vpop.f32.mrf.mxu0
    %v2069 = vadd.f32 0.0, %v2068
    %2070 = vdwg.mxu0
    %v2071 = vadd.f32 %v1247, %v2067
    %v2072 = vadd.f32 %v1251, %v2069
    %v2073 = vxor.u32 %v2071, 2147483648
    %v2074 = vxor.u32 %v2072, 2147483648
    %v2075 = vmul.f32 %v2073, 1.442695
    %v2076 = vpow.pop %v2075
    %v2077 = vmul.f32 %v2074, 1.442695
    %v2078 = vpow.pop %v2077
    %v2079 = vadd.f32 %v2076, 1.0
    %v2080 = vadd.f32 %v2078, 1.0
    %v2081 = vrcp.pop %v2079
    %v2082 = vmul.f32 1.0, %v2081
    %v2083 = vrcp.pop %v2080
    %v2084 = vmul.f32 1.0, %v2083
    %v2085 = vmul.f32 %v2084, 2.0
    %v2086 = vsub.f32 %v2085, 1.0
    %v2087 = vmul.f32 %v2082, %v1992
    %v2088 = vmul.f32 %v2082, %v2086
    %2090 = vrot.lane.b32.xlu0 %v2088, 64
    %v2091 = vpop.permute.xlu0 %2090
    %v2093 = vadd.f32 %v2087, %v2091
    %v2094 = vtanh.pop %v2093
    %v2095 = vmul.f32 %v2084, %v2094
    %v2096 = vrot.slane %v1489, 6
    %v2098 = vrot.slane %v1590, 4
    %v2100 = vrot.slane %v1691, 2
    %v2102 = vrot.slane %v1893, 6
    %v2104 = vrot.slane %v1994, 4
    %v2107 = vrot.slane %v2095, 2
    %v2109 = vsel %vm1182, %v1372, %v2096
    %v2110 = vsel %vm109, %v2109, %v2098
    %v2111 = vsel %vm1185, %v2110, %v2100
    %v2112 = vsel %vm1182, %v1792, %v2102
    %v2113 = vsel %vm109, %v2112, %v2104
    %v2114 = vsel %vm1185, %v2113, %v2107
    %v2115 = vld [vmem:[%s11] sm:$0xff]
    %v2116 = vld [vmem:[%s11 + $0x8] sm:$0xff]
    %v2117 = vld [vmem:[%s11 + $0x10] sm:$0xff]
    %v2118 = vld [vmem:[%s11 + $0x18] sm:$0xff]
    %v2119 = vld [vmem:[%s11 + $0x20] sm:$0xff]
    %v2120 = vld [vmem:[%s11 + $0x28] sm:$0xff]
    %v2121 = vld [vmem:[%s11 + $0x30] sm:$0xff]
    %v2122 = vld [vmem:[%s11 + $0x38] sm:$0xff]
    %v2123 = vld [vmem:[%s12] sm:$0x1]
    %v2125 = vlaneseq
    %v2126 = vshrl.u32 %v2125, 7
    %v2127 = vsub.s32 0, %v2126
    %v2128 = vrot.slane %v2123, %v2127
    %2132 = vrot.lane.b32.xlu0 %v2111, 64
    %v2133 = vpop.permute.xlu0 %2132
    %2134 = vrot.lane.b32.xlu0 %v2114, 64
    %v2135 = vpop.permute.xlu0 %2134
    %v2136 = vsel %vm300, %v2133, 0
    %v2138 = vsel %vm300, %v2135, 0
    %2140 = vmatprep.subr.mxu0 0.0
    %2141 = vmatpush1.msra.mxu0 0.0
    %2142 = vmatprep.subr.mxu0 0.0
    %2143 = vmatpush1.msra.mxu0 0.0
    %2144 = vmatprep.subr.mxu0 0.0
    %2145 = vmatpush1.msra.mxu0 0.0
    %2146 = vmatprep.subr.mxu0 0.0
    %2147 = vmatpush1.msra.mxu0 0.0
    %2148 = vmatprep.subr.mxu0 0.0
    %2149 = vmatpush1.msra.mxu0 0.0
    %2150 = vmatprep.subr.mxu0 0.0
    %2151 = vmatpush1.msra.mxu0 0.0
    %2152 = vmatprep.subr.mxu0 0.0
    %2153 = vmatpush1.msra.mxu0 0.0
    %2154 = vmatprep.subr.mxu0 0.0
    %2155 = vmatpush1.msra.mxu0 0.0
    %2156 = vmatprep.subr.mxu0 0.0
    %2157 = vmatpush1.msra.mxu0 %v2122
    %2158 = vmatprep.subr.mxu0 0.0
    %2159 = vmatpush1.msra.mxu0 %v2121
    %2160 = vmatprep.subr.mxu0 0.0
    %2161 = vmatpush1.msra.mxu0 %v2120
    %2162 = vmatprep.subr.mxu0 0.0
    %2163 = vmatpush1.msra.mxu0 %v2119
    %2164 = vmatprep.subr.mxu0 0.0
    %2165 = vmatpush1.msra.mxu0 %v2118
    %2166 = vmatprep.subr.mxu0 0.0
    %2167 = vmatpush1.msra.mxu0 %v2117
    %2168 = vmatprep.subr.mxu0 0.0
    %2169 = vmatpush1.msra.mxu0 %v2116
    %2170 = vmatprep.subr.mxu0 0.0
    %2171 = vmatpush1.msra.mxu0 %v2115
    %2172 = vmatprep.subr.mxu0 0.0
    %2173 = vmatpush2.msra.mxu0 0.0
    %2174 = vmatprep.subr.mxu0 0.0
    %2175 = vmatpush2.msra.mxu0 0.0
    %2176 = vmatprep.subr.mxu0 0.0
    %2177 = vmatpush2.msra.mxu0 0.0
    %2178 = vmatprep.subr.mxu0 0.0
    %2179 = vmatpush2.msra.mxu0 0.0
    %2180 = vmatprep.subr.mxu0 0.0
    %2181 = vmatpush2.msra.mxu0 0.0
    %2182 = vmatprep.subr.mxu0 0.0
    %2183 = vmatpush2.msra.mxu0 0.0
    %2184 = vmatprep.subr.mxu0 0.0
    %2185 = vmatpush2.msra.mxu0 0.0
    %2186 = vmatprep.subr.mxu0 0.0
    %2187 = vmatpush2.msra.mxu0 0.0
    %2188 = vmatprep.subr.mxu0 0.0
    %2189 = vmatpush2.msra.mxu0 0.0
    %2190 = vmatprep.subr.mxu0 0.0
    %2191 = vmatpush2.msra.mxu0 0.0
    %2192 = vmatprep.subr.mxu0 0.0
    %2193 = vmatpush2.msra.mxu0 0.0
    %2194 = vmatprep.subr.mxu0 0.0
    %2195 = vmatpush2.msra.mxu0 0.0
    %2196 = vmatprep.subr.mxu0 0.0
    %2197 = vmatpush2.msra.mxu0 0.0
    %2198 = vmatprep.subr.mxu0 0.0
    %2199 = vmatpush2.msra.mxu0 0.0
    %2200 = vmatprep.subr.mxu0 0.0
    %2201 = vmatpush2.msra.mxu0 0.0
    %2202 = vmatprep.subr.mxu0 0.0
    %2203 = vmatpush2.msra.mxu0 0.0
    %2204 = vmatprep.mubr.f32.mxu0 0.0
    %2205 = vmatmul.mubr.f32.gmra.mxu0 %v2136
    %v2206 = vpop.f32.mrf.mxu0
    %v2207 = vadd.f32 %v2128, %v2206
    %v2208 = vpop.f32.mrf.mxu0
    %2209 = vmatprep.mubr.f32.mxu0 0.0
    %2210 = vmatmul.mubr.f32.gmra.mxu0 %v2138
    %v2211 = vpop.f32.mrf.mxu0
    %v2212 = vadd.f32 %v2128, %v2211
    %v2213 = vpop.f32.mrf.mxu0
    %2214 = vdwg.mxu0
    %2215 = vst.msk [vmem:[%s13] sm:$0xff] %vm102, %v2207
    %2216 = vst.msk [vmem:[%s13 + $0x8] sm:$0xff] %vm102, %v2212
    // Predicated region
    $region66: #{tpu_custom_call.1} parent=1 // pred_check
      _
    $region67: #{tpu_custom_call.1} parent=1 // pred_check_branch
      %2218 = sbr.rel (0) target = $region69
    $region68: #{tpu_custom_call.1} parent=1 // pred_region
      _
    $region69: #{tpu_custom_call.1} parent=1 // pred_fallthru
      _
    // Predicated region
    $region70: #{tpu_custom_call.1} parent=1 // pred_check
      _
    $region71: #{tpu_custom_call.1} parent=1 // pred_check_branch
      %2220 = sbr.rel (0) target = $region73
    $region72: #{tpu_custom_call.1} parent=1 // pred_region
      _
    $region73: #{tpu_custom_call.1} parent=1 // pred_fallthru
      _
    %2221 = vsyncpa [#allocation3], 1
    %2222 = vsyncpa [#allocation5], 1

</llo_original>
